<compile_context>
chip_gen: v7x
topology: tpu7x:2x2x1
jax: 0.10.0
libtpu: 0.0.40
codegen_flags: <defaults>
</compile_context>

<pallas_src>
import functools
import math

import jax
import jax.numpy as jnp
from jax import lax
from jax.experimental import pallas as pl
from jax.experimental.pallas import tpu as pltpu


def _selfatt_kernel(x_ref, mask_ref, wqkv_ref, bqkv_ref, wo_ref, bo_ref,
                    gamma_ref, beta_ref, o_ref, x16_ref, ctx_ref,
                    *, head_dim, head_block, num_blocks):
    hb = pl.program_id(1)
    bw = head_block * head_dim
    inv_sqrt_d = jnp.float32(1.0 / math.sqrt(head_dim))

    # Hoisted f32->bf16 cast of x: once per batch element, reused every step.
    @pl.when(hb == 0)
    def _():
        x16_ref[...] = x_ref[0].astype(jnp.bfloat16)

    x16 = x16_ref[...]                       # (S, H) bf16
    mask = mask_ref[0]                       # (1, S) f32 additive mask

    # Fused Q/K/V projection for this head block: one wide MXU matmul
    # (S, H) @ (H, 3*bw), bf16 inputs, f32 accumulation, bias epilogue once.
    qkv = jnp.dot(x16, wqkv_ref[0], preferred_element_type=jnp.float32)
    qkv = qkv + bqkv_ref[0]                  # (S, 3*bw) f32

    # Per-head attention inside the head block (scores contract over d, which
    # is fixed by the algorithm; blocking widens the projections/dense).
    ctx_parts = []
    for j in range(head_block):
        q_h = (qkv[:, j * head_dim:(j + 1) * head_dim]
               * inv_sqrt_d).astype(jnp.bfloat16)                 # fold 1/sqrt(d)
        k_h = qkv[:, bw + j * head_dim: bw + (j + 1) * head_dim
                  ].astype(jnp.bfloat16)
        v_h = qkv[:, 2 * bw + j * head_dim: 2 * bw + (j + 1) * head_dim
                  ].astype(jnp.bfloat16)

        scores = lax.dot_general(                                 # (S, S) f32
            q_h, k_h, dimension_numbers=(((1,), (1,)), ((), ())),
            preferred_element_type=jnp.float32)
        scores = scores + mask

        m = jnp.max(scores, axis=-1, keepdims=True)
        e = jnp.exp(scores - m)
        p = e * pl.reciprocal(jnp.sum(e, axis=-1, keepdims=True), approx=True)

        ctx_parts.append(jnp.dot(p.astype(jnp.bfloat16), v_h,
                                 preferred_element_type=jnp.float32))  # (S, d)

    ctx_blk = ctx_parts[0] if head_block == 1 else jnp.concatenate(ctx_parts, -1)
    # Only a (S, bw) bf16 store per step (no (S,H) f32 read-modify-write).
    ctx_ref[hb] = ctx_blk.astype(jnp.bfloat16)

    # Finalize once per batch element: one full-K output dense (static sum of
    # K = bw matmuls over head blocks), residual add, LayerNorm(eps=1e-12).
    @pl.when(hb == num_blocks - 1)
    def _():
        out = x_ref[0] + bo_ref[0]                                # (S, H) f32
        for i in range(num_blocks):
            out = out + jnp.dot(ctx_ref[i], wo_ref[i],
                                preferred_element_type=jnp.float32)
        inv_h = jnp.float32(1.0 / out.shape[-1])
        mean = jnp.sum(out, axis=-1, keepdims=True) * inv_h
        centered = out - mean                 # centered two-pass variance
        var = jnp.sum(centered * centered, axis=-1, keepdims=True) * inv_h
        normed = centered * lax.rsqrt(var + 1e-12)
        o_ref[0] = normed * gamma_ref[0] + beta_ref[0]


def default_head_block(num_heads, head_dim):
    """Largest head block with width <= 256 lanes (v6e/v7x MXU); v5e may
    prefer passing head_block such that head_block*head_dim == 128."""
    best = 1
    for hb in range(1, num_heads + 1):
        if num_heads % hb == 0 and hb * head_dim <= 256:
            best = hb
    return best


def prepack_params(params, *, num_heads, head_block):
    """One-time host-side weight re-layout (do this at parameter-load time)."""
    H = params["wq"].shape[0]
    d = H // num_heads
    bw = head_block * d
    nhb = num_heads // head_block

    def cols(w):    # (H, H)[in,out] -> (nhb, H, bw): output cols per head block
        return jnp.transpose(w.reshape(H, nhb, bw), (1, 0, 2))

    def bias(b):    # (1, H) -> (nhb, 1, bw)
        return jnp.transpose(b.reshape(1, nhb, bw), (1, 0, 2))

    wqkv = jnp.concatenate([cols(params["wq"]), cols(params["wk"]),
                            cols(params["wv"])], axis=-1).astype(jnp.bfloat16)
    bqkv = jnp.concatenate([bias(params["bq"]), bias(params["bk"]),
                            bias(params["bv"])], axis=-1).astype(jnp.float32)
    wo = params["wo"].reshape(nhb, bw, H).astype(jnp.bfloat16)
    return {
        "wqkv": wqkv,                       # (nhb, H, 3*bw) bf16
        "bqkv": bqkv,                       # (nhb, 1, 3*bw) f32
        "wo": wo,                           # (nhb, bw, H)   bf16
        "bo": params["bo"].astype(jnp.float32),
        "gamma": params["gamma"].astype(jnp.float32),
        "beta": params["beta"].astype(jnp.float32),
    }


def bert_selfatt_layer(x, attention_mask, packed, *, num_heads, head_block):
    """x: (B, S, H) f32; attention_mask: (B, 1, 1, S) additive mask;
    packed: output of prepack_params."""
    B, S, H = x.shape
    d = H // num_heads
    bw = head_block * d
    nhb = num_heads // head_block
    mask2d = attention_mask.reshape(B, 1, S).astype(jnp.float32)

    kernel = functools.partial(_selfatt_kernel, head_dim=d,
                               head_block=head_block, num_blocks=nhb)

    in_specs = [
        pl.BlockSpec((1, S, H), lambda b, h: (b, 0, 0)),          # x (f32)
        pl.BlockSpec((1, 1, S), lambda b, h: (b, 0, 0)),          # mask
        pl.BlockSpec((1, H, 3 * bw), lambda b, h: (h, 0, 0)),     # Wqkv[block]
        pl.BlockSpec((1, 1, 3 * bw), lambda b, h: (h, 0, 0)),     # bqkv[block]
        pl.BlockSpec((nhb, bw, H), lambda b, h: (0, 0, 0)),       # Wo (full)
        pl.BlockSpec((1, H), lambda b, h: (0, 0)),                # bo
        pl.BlockSpec((1, H), lambda b, h: (0, 0)),                # gamma
        pl.BlockSpec((1, H), lambda b, h: (0, 0)),                # beta
    ]

    return pl.pallas_call(
        kernel,
        out_shape=jax.ShapeDtypeStruct((B, S, H), jnp.float32),
        grid=(B, nhb),
        in_specs=in_specs,
        out_specs=pl.BlockSpec((1, S, H), lambda b, h: (b, 0, 0)),
        scratch_shapes=[pltpu.VMEM((S, H), jnp.bfloat16),         # x in bf16
                        pltpu.VMEM((nhb, S, bw), jnp.bfloat16)],  # ctx per block
        compiler_params=pltpu.CompilerParams(
            dimension_semantics=("parallel", "arbitrary")),
    )(x, mask2d, packed["wqkv"], packed["bqkv"], packed["wo"],
      packed["bo"], packed["gamma"], packed["beta"])


def _reference(x, attention_mask, params, *, num_heads):
    """Plain-JAX reference mirroring the PyTorch forward (eval mode)."""
    B, S, H = x.shape
    d = H // num_heads
    q = x @ params["wq"] + params["bq"][0]
    k = x @ params["wk"] + params["bk"][0]
    v = x @ params["wv"] + params["bv"][0]

    def split(t):  # (B,S,H) -> (B,nh,S,d)
        return t.reshape(B, S, num_heads, d).transpose(0, 2, 1, 3)

    qh, kh, vh = split(q), split(k), split(v)
    scores = jnp.einsum("bhqd,bhkd->bhqk", qh, kh) / math.sqrt(d)
    scores = scores + attention_mask
    probs = jax.nn.softmax(scores, axis=-1)
    ctx = jnp.einsum("bhqk,bhkd->bhqd", probs, vh)
    ctx = ctx.transpose(0, 2, 1, 3).reshape(B, S, H)
    out = ctx @ params["wo"] + params["bo"][0]
    resid = out + x
    mean = resid.mean(-1, keepdims=True)
    var = ((resid - mean) ** 2).mean(-1, keepdims=True)
    return (resid - mean) / jnp.sqrt(var + 1e-12) * params["gamma"][0] + params["beta"][0]


if __name__ == "__main__":
    B, S, H, NH = 2, 8, 32, 4

    key = jax.random.PRNGKey(0)
    keys = jax.random.split(key, 8)

    # Deterministic synthetic parameters (shapes from BertAttention/BertAttOutput).
    # Linear weights stored as [in, out] (i.e. PyTorch weight transposed).
    std = 0.02
    params = {
        "wq": std * jax.random.normal(keys[0], (H, H), jnp.float32),
        "bq": jnp.zeros((1, H), jnp.float32),
        "wk": std * jax.random.normal(keys[1], (H, H), jnp.float32),
        "bk": jnp.zeros((1, H), jnp.float32),
        "wv": std * jax.random.normal(keys[2], (H, H), jnp.float32),
        "bv": jnp.zeros((1, H), jnp.float32),
        "wo": std * jax.random.normal(keys[3], (H, H), jnp.float32),
        "bo": jnp.zeros((1, H), jnp.float32),
        "gamma": jnp.ones((1, H), jnp.float32),
        "beta": jnp.zeros((1, H), jnp.float32),
    }

    x = jax.random.normal(keys[4], (B, S, H), jnp.float32)

    # BERT-style additive attention mask: (B, 1, 1, S); mask out last 2 keys of batch 1.
    valid = jnp.ones((B, S), jnp.float32).at[1, -2:].set(0.0)
    attention_mask = (1.0 - valid)[:, None, None, :] * -10000.0

    head_block = default_head_block(NH, H // NH)
    packed = prepack_params(params, num_heads=NH, head_block=head_block)  # once
    packed = jax.tree_util.tree_map(jax.block_until_ready, packed)

    out = bert_selfatt_layer(x, attention_mask, packed,
                             num_heads=NH, head_block=head_block)
    out = jax.block_until_ready(out)

    ref = _reference(x, attention_mask, params, num_heads=NH)
    # Tolerance reflects bf16 MXU inputs + pl.reciprocal(approx=True) softmax.
    assert jnp.allclose(out, ref, atol=2e-2, rtol=2e-2), "mismatch vs reference"

    # TODO(synk): dropout (attention_probs_dropout_prob / hidden_dropout_prob) is
    # identity here (eval mode); adapter/LoRA branches are disabled (config=None).
    print("KERNEL_OK")
</pallas_src>

<mosaic_0001>
module attributes {stable_mosaic.version = 11 : i64} {
  func.func @_selfatt_kernel(%arg0: i32, %arg1: i32, %arg2: memref<1x8x32xf32, #tpu.memory_space<vmem>>, %arg3: memref<1x1x8xf32, #tpu.memory_space<vmem>>, %arg4: memref<1x32x96xbf16, #tpu.memory_space<vmem>>, %arg5: memref<1x1x96xf32, #tpu.memory_space<vmem>>, %arg6: memref<1x32x32xbf16, #tpu.memory_space<vmem>>, %arg7: memref<1x32xf32, #tpu.memory_space<vmem>>, %arg8: memref<1x32xf32, #tpu.memory_space<vmem>>, %arg9: memref<1x32xf32, #tpu.memory_space<vmem>>, %arg10: memref<1x8x32xf32, #tpu.memory_space<vmem>>, %arg11: memref<8x32xbf16, #tpu.memory_space<vmem>>, %arg12: memref<1x8x32xbf16, #tpu.memory_space<vmem>>) attributes {dimension_semantics = [#tpu.dimension_semantics<parallel>, #tpu.dimension_semantics<arbitrary>], iteration_bounds = array<i64: 2, 1>, scalar_prefetch = 0 : i64, scratch_operands = 2 : i64, tpu.core_type = #tpu.core_type<tc>, window_params = [{transform_indices = @transform_0, window_bounds = array<i64: 1, 8, 32>}, {transform_indices = @transform_1, window_bounds = array<i64: 1, 1, 8>}, {transform_indices = @transform_2, window_bounds = array<i64: 1, 32, 96>}, {transform_indices = @transform_3, window_bounds = array<i64: 1, 1, 96>}, {pipeline_mode = #tpu.pipeline_mode<synchronous>, transform_indices = @transform_4, window_bounds = array<i64: 1, 32, 32>}, {pipeline_mode = #tpu.pipeline_mode<synchronous>, transform_indices = @transform_5, window_bounds = array<i64: 1, 32>}, {pipeline_mode = #tpu.pipeline_mode<synchronous>, transform_indices = @transform_6, window_bounds = array<i64: 1, 32>}, {pipeline_mode = #tpu.pipeline_mode<synchronous>, transform_indices = @transform_7, window_bounds = array<i64: 1, 32>}, {transform_indices = @transform_8, window_bounds = array<i64: 1, 8, 32>}]} {
    %c0_i32 = arith.constant 0 : i32
    %0 = arith.cmpi eq, %arg1, %c0_i32 : i32
    %1 = arith.extui %0 : i1 to i32
    %c0_i32_0 = arith.constant 0 : i32
    %2 = arith.cmpi ne, %1, %c0_i32_0 : i32
    scf.if %2 {
      %c0_35 = arith.constant 0 : index
      %c0_36 = arith.constant 0 : index
      %c0_37 = arith.constant 0 : index
      %114 = vector.load %arg2[%c0_35, %c0_36, %c0_37] : memref<1x8x32xf32, #tpu.memory_space<vmem>>, vector<1x8x32xf32>
      %115 = vector.shape_cast %114 : vector<1x8x32xf32> to vector<8x32xf32>
      %116 = arith.truncf %115 : vector<8x32xf32> to vector<8x32xbf16>
      %c0_38 = arith.constant 0 : index
      %c0_39 = arith.constant 0 : index
      %117 = vector.load %arg11[%c0_38, %c0_39] : memref<8x32xbf16, #tpu.memory_space<vmem>>, vector<8x32xbf16>
      tpu.vector_store %arg11[%c0_38, %c0_39], %116 {strides = array<i32>} : memref<8x32xbf16, #tpu.memory_space<vmem>>, vector<8x32xbf16>,
    } else {
    }
    %c0 = arith.constant 0 : index
    %c0_1 = arith.constant 0 : index
    %3 = vector.load %arg11[%c0, %c0_1] : memref<8x32xbf16, #tpu.memory_space<vmem>>, vector<8x32xbf16>
    %c0_2 = arith.constant 0 : index
    %c0_3 = arith.constant 0 : index
    %c0_4 = arith.constant 0 : index
    %4 = vector.load %arg3[%c0_2, %c0_3, %c0_4] : memref<1x1x8xf32, #tpu.memory_space<vmem>>, vector<1x1x8xf32>
    %5 = vector.shape_cast %4 : vector<1x1x8xf32> to vector<1x8xf32>
    %c0_5 = arith.constant 0 : index
    %c0_6 = arith.constant 0 : index
    %c0_7 = arith.constant 0 : index
    %6 = vector.load %arg4[%c0_5, %c0_6, %c0_7] : memref<1x32x96xbf16, #tpu.memory_space<vmem>>, vector<1x32x96xbf16>
    %7 = vector.shape_cast %6 : vector<1x32x96xbf16> to vector<32x96xbf16>
    %cst = arith.constant dense<0.000000e+00> : vector<8x96xf32>
    %8 = tpu.matmul %3, %7, %cst {dimension_numbers = #tpu.dot_dimension_numbers<[1], [0], [0], [1], [0, 0, 1, 1], [], []>} : vector<8x32xbf16>, vector<32x96xbf16>, vector<8x96xf32> -> vector<8x96xf32>
    %c0_8 = arith.constant 0 : index
    %c0_9 = arith.constant 0 : index
    %c0_10 = arith.constant 0 : index
    %9 = vector.load %arg5[%c0_8, %c0_9, %c0_10] : memref<1x1x96xf32, #tpu.memory_space<vmem>>, vector<1x1x96xf32>
    %10 = vector.shape_cast %9 : vector<1x1x96xf32> to vector<1x96xf32>
    %11 = vector.broadcast %10 : vector<1x96xf32> to vector<8x96xf32>
    %12 = arith.addf %8, %11 : vector<8x96xf32>
    %13 = vector.extract_strided_slice %12 {offsets = [0, 0], sizes = [8, 8], strides = [1, 1]} : vector<8x96xf32> to vector<8x8xf32>
    %cst_11 = arith.constant 0.353553385 : f32
    %14 = vector.broadcast %cst_11 : f32 to vector<8x8xf32>
    %15 = arith.mulf %13, %14 : vector<8x8xf32>
    %16 = arith.truncf %15 : vector<8x8xf32> to vector<8x8xbf16>
    %17 = vector.extract_strided_slice %12 {offsets = [0, 32], sizes = [8, 8], strides = [1, 1]} : vector<8x96xf32> to vector<8x8xf32>
    %18 = arith.truncf %17 : vector<8x8xf32> to vector<8x8xbf16>
    %19 = vector.extract_strided_slice %12 {offsets = [0, 64], sizes = [8, 8], strides = [1, 1]} : vector<8x96xf32> to vector<8x8xf32>
    %20 = arith.truncf %19 : vector<8x8xf32> to vector<8x8xbf16>
    %cst_12 = arith.constant dense<0.000000e+00> : vector<8x8xf32>
    %21 = tpu.matmul %16, %18, %cst_12 {dimension_numbers = #tpu.dot_dimension_numbers<[1], [1], [0], [0], [0, 0, 1, 0], [], []>} : vector<8x8xbf16>, vector<8x8xbf16>, vector<8x8xf32> -> vector<8x8xf32>
    %22 = vector.broadcast %5 : vector<1x8xf32> to vector<8x8xf32>
    %23 = arith.addf %21, %22 : vector<8x8xf32>
    %cst_13 = arith.constant dense<0xFF800000> : vector<8xf32>
    %24 = vector.multi_reduction <maximumf>, %23, %cst_13 [1] : vector<8x8xf32> to vector<8xf32>
    %25 = vector.shape_cast %24 : vector<8xf32> to vector<8x1xf32>
    %26 = vector.broadcast %25 : vector<8x1xf32> to vector<8x8xf32>
    %27 = arith.subf %23, %26 : vector<8x8xf32>
    %28 = math.exp %27 : vector<8x8xf32>
    %cst_14 = arith.constant dense<0.000000e+00> : vector<8xf32>
    %29 = vector.multi_reduction <add>, %28, %cst_14 [1] : vector<8x8xf32> to vector<8xf32>
    %30 = vector.shape_cast %29 : vector<8xf32> to vector<8x1xf32>
    %31 = tpu.reciprocal %30 {approx = true} : vector<8x1xf32> -> vector<8x1xf32>
    %32 = vector.broadcast %31 : vector<8x1xf32> to vector<8x8xf32>
    %33 = arith.mulf %28, %32 : vector<8x8xf32>
    %34 = arith.truncf %33 : vector<8x8xf32> to vector<8x8xbf16>
    %cst_15 = arith.constant dense<0.000000e+00> : vector<8x8xf32>
    %35 = tpu.matmul %34, %20, %cst_15 {dimension_numbers = #tpu.dot_dimension_numbers<[1], [0], [0], [1], [0, 0, 1, 1], [], []>} : vector<8x8xbf16>, vector<8x8xbf16>, vector<8x8xf32> -> vector<8x8xf32>
    %36 = vector.extract_strided_slice %12 {offsets = [0, 8], sizes = [8, 8], strides = [1, 1]} : vector<8x96xf32> to vector<8x8xf32>
    %cst_16 = arith.constant 0.353553385 : f32
    %37 = vector.broadcast %cst_16 : f32 to vector<8x8xf32>
    %38 = arith.mulf %36, %37 : vector<8x8xf32>
    %39 = arith.truncf %38 : vector<8x8xf32> to vector<8x8xbf16>
    %40 = vector.extract_strided_slice %12 {offsets = [0, 40], sizes = [8, 8], strides = [1, 1]} : vector<8x96xf32> to vector<8x8xf32>
    %41 = arith.truncf %40 : vector<8x8xf32> to vector<8x8xbf16>
    %42 = vector.extract_strided_slice %12 {offsets = [0, 72], sizes = [8, 8], strides = [1, 1]} : vector<8x96xf32> to vector<8x8xf32>
    %43 = arith.truncf %42 : vector<8x8xf32> to vector<8x8xbf16>
    %cst_17 = arith.constant dense<0.000000e+00> : vector<8x8xf32>
    %44 = tpu.matmul %39, %41, %cst_17 {dimension_numbers = #tpu.dot_dimension_numbers<[1], [1], [0], [0], [0, 0, 1, 0], [], []>} : vector<8x8xbf16>, vector<8x8xbf16>, vector<8x8xf32> -> vector<8x8xf32>
    %45 = vector.broadcast %5 : vector<1x8xf32> to vector<8x8xf32>
    %46 = arith.addf %44, %45 : vector<8x8xf32>
    %cst_18 = arith.constant dense<0xFF800000> : vector<8xf32>
    %47 = vector.multi_reduction <maximumf>, %46, %cst_18 [1] : vector<8x8xf32> to vector<8xf32>
    %48 = vector.shape_cast %47 : vector<8xf32> to vector<8x1xf32>
    %49 = vector.broadcast %48 : vector<8x1xf32> to vector<8x8xf32>
    %50 = arith.subf %46, %49 : vector<8x8xf32>
    %51 = math.exp %50 : vector<8x8xf32>
    %cst_19 = arith.constant dense<0.000000e+00> : vector<8xf32>
    %52 = vector.multi_reduction <add>, %51, %cst_19 [1] : vector<8x8xf32> to vector<8xf32>
    %53 = vector.shape_cast %52 : vector<8xf32> to vector<8x1xf32>
    %54 = tpu.reciprocal %53 {approx = true} : vector<8x1xf32> -> vector<8x1xf32>
    %55 = vector.broadcast %54 : vector<8x1xf32> to vector<8x8xf32>
    %56 = arith.mulf %51, %55 : vector<8x8xf32>
    %57 = arith.truncf %56 : vector<8x8xf32> to vector<8x8xbf16>
    %cst_20 = arith.constant dense<0.000000e+00> : vector<8x8xf32>
    %58 = tpu.matmul %57, %43, %cst_20 {dimension_numbers = #tpu.dot_dimension_numbers<[1], [0], [0], [1], [0, 0, 1, 1], [], []>} : vector<8x8xbf16>, vector<8x8xbf16>, vector<8x8xf32> -> vector<8x8xf32>
    %59 = vector.extract_strided_slice %12 {offsets = [0, 16], sizes = [8, 8], strides = [1, 1]} : vector<8x96xf32> to vector<8x8xf32>
    %cst_21 = arith.constant 0.353553385 : f32
    %60 = vector.broadcast %cst_21 : f32 to vector<8x8xf32>
    %61 = arith.mulf %59, %60 : vector<8x8xf32>
    %62 = arith.truncf %61 : vector<8x8xf32> to vector<8x8xbf16>
    %63 = vector.extract_strided_slice %12 {offsets = [0, 48], sizes = [8, 8], strides = [1, 1]} : vector<8x96xf32> to vector<8x8xf32>
    %64 = arith.truncf %63 : vector<8x8xf32> to vector<8x8xbf16>
    %65 = vector.extract_strided_slice %12 {offsets = [0, 80], sizes = [8, 8], strides = [1, 1]} : vector<8x96xf32> to vector<8x8xf32>
    %66 = arith.truncf %65 : vector<8x8xf32> to vector<8x8xbf16>
    %cst_22 = arith.constant dense<0.000000e+00> : vector<8x8xf32>
    %67 = tpu.matmul %62, %64, %cst_22 {dimension_numbers = #tpu.dot_dimension_numbers<[1], [1], [0], [0], [0, 0, 1, 0], [], []>} : vector<8x8xbf16>, vector<8x8xbf16>, vector<8x8xf32> -> vector<8x8xf32>
    %68 = vector.broadcast %5 : vector<1x8xf32> to vector<8x8xf32>
    %69 = arith.addf %67, %68 : vector<8x8xf32>
    %cst_23 = arith.constant dense<0xFF800000> : vector<8xf32>
    %70 = vector.multi_reduction <maximumf>, %69, %cst_23 [1] : vector<8x8xf32> to vector<8xf32>
    %71 = vector.shape_cast %70 : vector<8xf32> to vector<8x1xf32>
    %72 = vector.broadcast %71 : vector<8x1xf32> to vector<8x8xf32>
    %73 = arith.subf %69, %72 : vector<8x8xf32>
    %74 = math.exp %73 : vector<8x8xf32>
    %cst_24 = arith.constant dense<0.000000e+00> : vector<8xf32>
    %75 = vector.multi_reduction <add>, %74, %cst_24 [1] : vector<8x8xf32> to vector<8xf32>
    %76 = vector.shape_cast %75 : vector<8xf32> to vector<8x1xf32>
    %77 = tpu.reciprocal %76 {approx = true} : vector<8x1xf32> -> vector<8x1xf32>
    %78 = vector.broadcast %77 : vector<8x1xf32> to vector<8x8xf32>
    %79 = arith.mulf %74, %78 : vector<8x8xf32>
    %80 = arith.truncf %79 : vector<8x8xf32> to vector<8x8xbf16>
    %cst_25 = arith.constant dense<0.000000e+00> : vector<8x8xf32>
    %81 = tpu.matmul %80, %66, %cst_25 {dimension_numbers = #tpu.dot_dimension_numbers<[1], [0], [0], [1], [0, 0, 1, 1], [], []>} : vector<8x8xbf16>, vector<8x8xbf16>, vector<8x8xf32> -> vector<8x8xf32>
    %82 = vector.extract_strided_slice %12 {offsets = [0, 24], sizes = [8, 8], strides = [1, 1]} : vector<8x96xf32> to vector<8x8xf32>
    %cst_26 = arith.constant 0.353553385 : f32
    %83 = vector.broadcast %cst_26 : f32 to vector<8x8xf32>
    %84 = arith.mulf %82, %83 : vector<8x8xf32>
    %85 = arith.truncf %84 : vector<8x8xf32> to vector<8x8xbf16>
    %86 = vector.extract_strided_slice %12 {offsets = [0, 56], sizes = [8, 8], strides = [1, 1]} : vector<8x96xf32> to vector<8x8xf32>
    %87 = arith.truncf %86 : vector<8x8xf32> to vector<8x8xbf16>
    %88 = vector.extract_strided_slice %12 {offsets = [0, 88], sizes = [8, 8], strides = [1, 1]} : vector<8x96xf32> to vector<8x8xf32>
    %89 = arith.truncf %88 : vector<8x8xf32> to vector<8x8xbf16>
    %cst_27 = arith.constant dense<0.000000e+00> : vector<8x8xf32>
    %90 = tpu.matmul %85, %87, %cst_27 {dimension_numbers = #tpu.dot_dimension_numbers<[1], [1], [0], [0], [0, 0, 1, 0], [], []>} : vector<8x8xbf16>, vector<8x8xbf16>, vector<8x8xf32> -> vector<8x8xf32>
    %91 = vector.broadcast %5 : vector<1x8xf32> to vector<8x8xf32>
    %92 = arith.addf %90, %91 : vector<8x8xf32>
    %cst_28 = arith.constant dense<0xFF800000> : vector<8xf32>
    %93 = vector.multi_reduction <maximumf>, %92, %cst_28 [1] : vector<8x8xf32> to vector<8xf32>
    %94 = vector.shape_cast %93 : vector<8xf32> to vector<8x1xf32>
    %95 = vector.broadcast %94 : vector<8x1xf32> to vector<8x8xf32>
    %96 = arith.subf %92, %95 : vector<8x8xf32>
    %97 = math.exp %96 : vector<8x8xf32>
    %cst_29 = arith.constant dense<0.000000e+00> : vector<8xf32>
    %98 = vector.multi_reduction <add>, %97, %cst_29 [1] : vector<8x8xf32> to vector<8xf32>
    %99 = vector.shape_cast %98 : vector<8xf32> to vector<8x1xf32>
    %100 = tpu.reciprocal %99 {approx = true} : vector<8x1xf32> -> vector<8x1xf32>
    %101 = vector.broadcast %100 : vector<8x1xf32> to vector<8x8xf32>
    %102 = arith.mulf %97, %101 : vector<8x8xf32>
    %103 = arith.truncf %102 : vector<8x8xf32> to vector<8x8xbf16>
    %cst_30 = arith.constant dense<0.000000e+00> : vector<8x8xf32>
    %104 = tpu.matmul %103, %89, %cst_30 {dimension_numbers = #tpu.dot_dimension_numbers<[1], [0], [0], [1], [0, 0, 1, 1], [], []>} : vector<8x8xbf16>, vector<8x8xbf16>, vector<8x8xf32> -> vector<8x8xf32>
    %105 = tpu.concatenate %35, %58, %81, %104 in 1 : vector<8x8xf32>, vector<8x8xf32>, vector<8x8xf32>, vector<8x8xf32> -> vector<8x32xf32>
    %106 = arith.truncf %105 : vector<8x32xf32> to vector<8x32xbf16>
    %107 = arith.index_cast %arg1 : i32 to index
    %c0_31 = arith.constant 0 : index
    %c0_32 = arith.constant 0 : index
    %108 = vector.load %arg12[%107, %c0_31, %c0_32] : memref<1x8x32xbf16, #tpu.memory_space<vmem>>, vector<1x8x32xbf16>
    %109 = vector.shape_cast %108 : vector<1x8x32xbf16> to vector<8x32xbf16>
    %110 = vector.shape_cast %106 : vector<8x32xbf16> to vector<1x8x32xbf16>
    tpu.vector_store %arg12[%107, %c0_31, %c0_32], %110 {strides = array<i32>} : memref<1x8x32xbf16, #tpu.memory_space<vmem>>, vector<1x8x32xbf16>,
    %c0_i32_33 = arith.constant 0 : i32
    %111 = arith.cmpi eq, %arg1, %c0_i32_33 : i32
    %112 = arith.extui %111 : i1 to i32
    %c0_i32_34 = arith.constant 0 : i32
    %113 = arith.cmpi ne, %112, %c0_i32_34 : i32
    scf.if %113 {
      %c0_35 = arith.constant 0 : index
      %c0_36 = arith.constant 0 : index
      %c0_37 = arith.constant 0 : index
      %114 = vector.load %arg2[%c0_35, %c0_36, %c0_37] : memref<1x8x32xf32, #tpu.memory_space<vmem>>, vector<1x8x32xf32>
      %115 = vector.shape_cast %114 : vector<1x8x32xf32> to vector<8x32xf32>
      %c0_38 = arith.constant 0 : index
      %c0_39 = arith.constant 0 : index
      %116 = vector.load %arg7[%c0_38, %c0_39] : memref<1x32xf32, #tpu.memory_space<vmem>>, vector<1x32xf32>
      %117 = vector.shape_cast %116 : vector<1x32xf32> to vector<32xf32>
      %118 = vector.shape_cast %117 : vector<32xf32> to vector<1x32xf32>
      %119 = vector.broadcast %118 : vector<1x32xf32> to vector<8x32xf32>
      %120 = arith.addf %115, %119 : vector<8x32xf32>
      %c0_40 = arith.constant 0 : index
      %c0_41 = arith.constant 0 : index
      %c0_42 = arith.constant 0 : index
      %121 = vector.load %arg12[%c0_40, %c0_41, %c0_42] : memref<1x8x32xbf16, #tpu.memory_space<vmem>>, vector<1x8x32xbf16>
      %122 = vector.shape_cast %121 : vector<1x8x32xbf16> to vector<8x32xbf16>
      %c0_43 = arith.constant 0 : index
      %c0_44 = arith.constant 0 : index
      %c0_45 = arith.constant 0 : index
      %123 = vector.load %arg6[%c0_43, %c0_44, %c0_45] : memref<1x32x32xbf16, #tpu.memory_space<vmem>>, vector<1x32x32xbf16>
      %124 = vector.shape_cast %123 : vector<1x32x32xbf16> to vector<32x32xbf16>
      %cst_46 = arith.constant dense<0.000000e+00> : vector<8x32xf32>
      %125 = tpu.matmul %122, %124, %cst_46 {dimension_numbers = #tpu.dot_dimension_numbers<[1], [0], [0], [1], [0, 0, 1, 1], [], []>} : vector<8x32xbf16>, vector<32x32xbf16>, vector<8x32xf32> -> vector<8x32xf32>
      %126 = arith.addf %120, %125 : vector<8x32xf32>
      %cst_47 = arith.constant dense<0.000000e+00> : vector<8xf32>
      %127 = vector.multi_reduction <add>, %126, %cst_47 [1] : vector<8x32xf32> to vector<8xf32>
      %128 = vector.shape_cast %127 : vector<8xf32> to vector<8x1xf32>
      %cst_48 = arith.constant 3.125000e-02 : f32
      %129 = vector.broadcast %cst_48 : f32 to vector<8x1xf32>
      %130 = arith.mulf %128, %129 : vector<8x1xf32>
      %131 = vector.broadcast %130 : vector<8x1xf32> to vector<8x32xf32>
      %132 = arith.subf %126, %131 : vector<8x32xf32>
      %133 = arith.mulf %132, %132 : vector<8x32xf32>
      %cst_49 = arith.constant dense<0.000000e+00> : vector<8xf32>
      %134 = vector.multi_reduction <add>, %133, %cst_49 [1] : vector<8x32xf32> to vector<8xf32>
      %135 = vector.shape_cast %134 : vector<8xf32> to vector<8x1xf32>
      %cst_50 = arith.constant 3.125000e-02 : f32
      %136 = vector.broadcast %cst_50 : f32 to vector<8x1xf32>
      %137 = arith.mulf %135, %136 : vector<8x1xf32>
      %cst_51 = arith.constant 9.99999996E-13 : f32
      %138 = vector.broadcast %cst_51 : f32 to vector<8x1xf32>
      %139 = arith.addf %137, %138 : vector<8x1xf32>
      %140 = math.rsqrt %139 : vector<8x1xf32>
      %141 = vector.broadcast %140 : vector<8x1xf32> to vector<8x32xf32>
      %142 = arith.mulf %132, %141 : vector<8x32xf32>
      %c0_52 = arith.constant 0 : index
      %c0_53 = arith.constant 0 : index
      %143 = vector.load %arg8[%c0_52, %c0_53] : memref<1x32xf32, #tpu.memory_space<vmem>>, vector<1x32xf32>
      %144 = vector.shape_cast %143 : vector<1x32xf32> to vector<32xf32>
      %145 = vector.shape_cast %144 : vector<32xf32> to vector<1x32xf32>
      %146 = vector.broadcast %145 : vector<1x32xf32> to vector<8x32xf32>
      %147 = arith.mulf %142, %146 : vector<8x32xf32>
      %c0_54 = arith.constant 0 : index
      %c0_55 = arith.constant 0 : index
      %148 = vector.load %arg9[%c0_54, %c0_55] : memref<1x32xf32, #tpu.memory_space<vmem>>, vector<1x32xf32>
      %149 = vector.shape_cast %148 : vector<1x32xf32> to vector<32xf32>
      %150 = vector.shape_cast %149 : vector<32xf32> to vector<1x32xf32>
      %151 = vector.broadcast %150 : vector<1x32xf32> to vector<8x32xf32>
      %152 = arith.addf %147, %151 : vector<8x32xf32>
      %c0_56 = arith.constant 0 : index
      %c0_57 = arith.constant 0 : index
      %c0_58 = arith.constant 0 : index
      %153 = vector.load %arg10[%c0_56, %c0_57, %c0_58] : memref<1x8x32xf32, #tpu.memory_space<vmem>>, vector<1x8x32xf32>
      %154 = vector.shape_cast %153 : vector<1x8x32xf32> to vector<8x32xf32>
      %155 = vector.shape_cast %152 : vector<8x32xf32> to vector<1x8x32xf32>
      tpu.vector_store %arg10[%c0_56, %c0_57, %c0_58], %155 {strides = array<i32>} : memref<1x8x32xf32, #tpu.memory_space<vmem>>, vector<1x8x32xf32>,
    } else {
    }
    return
  }
  func.func @transform_0(%arg0: i32, %arg1: i32) -> (i32, i32, i32) {
    %c0_i32 = arith.constant 0 : i32
    %c0_i32_0 = arith.constant 0 : i32
    %c0_i32_1 = arith.constant 0 : i32
    return %arg0, %c0_i32, %c0_i32_0 : i32, i32, i32
  }
  func.func @transform_1(%arg0: i32, %arg1: i32) -> (i32, i32, i32) {
    %c0_i32 = arith.constant 0 : i32
    %c0_i32_0 = arith.constant 0 : i32
    %c0_i32_1 = arith.constant 0 : i32
    return %arg0, %c0_i32, %c0_i32_0 : i32, i32, i32
  }
  func.func @transform_2(%arg0: i32, %arg1: i32) -> (i32, i32, i32) {
    %c0_i32 = arith.constant 0 : i32
    %c0_i32_0 = arith.constant 0 : i32
    %c0_i32_1 = arith.constant 0 : i32
    return %arg1, %c0_i32, %c0_i32_0 : i32, i32, i32
  }
  func.func @transform_3(%arg0: i32, %arg1: i32) -> (i32, i32, i32) {
    %c0_i32 = arith.constant 0 : i32
    %c0_i32_0 = arith.constant 0 : i32
    %c0_i32_1 = arith.constant 0 : i32
    return %arg1, %c0_i32, %c0_i32_0 : i32, i32, i32
  }
  func.func @transform_4(%arg0: i32, %arg1: i32) -> (i32, i32, i32) {
    %c0_i32 = arith.constant 0 : i32
    %c0_i32_0 = arith.constant 0 : i32
    %c0_i32_1 = arith.constant 0 : i32
    %c0_i32_2 = arith.constant 0 : i32
    return %c0_i32, %c0_i32_0, %c0_i32_1 : i32, i32, i32
  }
  func.func @transform_5(%arg0: i32, %arg1: i32) -> (i32, i32) {
    %c0_i32 = arith.constant 0 : i32
    %c0_i32_0 = arith.constant 0 : i32
    %c0_i32_1 = arith.constant 0 : i32
    return %c0_i32, %c0_i32_0 : i32, i32
  }
  func.func @transform_6(%arg0: i32, %arg1: i32) -> (i32, i32) {
    %c0_i32 = arith.constant 0 : i32
    %c0_i32_0 = arith.constant 0 : i32
    %c0_i32_1 = arith.constant 0 : i32
    return %c0_i32, %c0_i32_0 : i32, i32
  }
  func.func @transform_7(%arg0: i32, %arg1: i32) -> (i32, i32) {
    %c0_i32 = arith.constant 0 : i32
    %c0_i32_0 = arith.constant 0 : i32
    %c0_i32_1 = arith.constant 0 : i32
    return %c0_i32, %c0_i32_0 : i32, i32
  }
  func.func @transform_8(%arg0: i32, %arg1: i32) -> (i32, i32, i32) {
    %c0_i32 = arith.constant 0 : i32
    %c0_i32_0 = arith.constant 0 : i32
    %c0_i32_1 = arith.constant 0 : i32
    return %arg0, %c0_i32, %c0_i32_0 : i32, i32, i32
  }
}

</mosaic_0001>

<llo_original>
// kernel: tpu_custom_call.1
$region0: #{tpu_custom_call.1}
  #allocation0 [shape = 'u32[]', space=smem, size = 0x4, offset = 0x4, fixed_abs, tag = 'smem constant byte address 0x4 - core index']
  #allocation1 [shape = 'u32[144,128]{1,0:T(1,128)}', space=vmem, size = 0x12000, scoped, tag = 'internal scratch']
  #allocation2 [shape = 'bf16[8,32]{1,0:T(8,128)(2,1)}', space=vmem, size = 0x800, scoped, tag = 'scratch operand']
  #allocation3 [shape = 'bf16[1,8,32]{2,1,0:T(8,128)(2,1)}', space=vmem, size = 0x800, scoped, tag = 'scratch operand']
  %s0 = inlined_call_operand.hbm [shape: f32[2,8,32], index: 0, kind: input, shape index: {}]
  %s1 = inlined_call_operand.vmem [shape: f32[2,1,8], index: 1, kind: input, shape index: {}]
  %s2 = inlined_call_operand.hbm [shape: bf16[1,32,96], index: 2, kind: input, shape index: {}]
  %s3 = inlined_call_operand.vmem [shape: f32[1,1,96], index: 3, kind: input, shape index: {}]
  %s4 = inlined_call_operand.hbm [shape: bf16[1,32,32], index: 4, kind: input, shape index: {}]
  %s5 = inlined_call_operand.vmem [shape: f32[1,32], index: 5, kind: input, shape index: {}]
  %s6 = inlined_call_operand.vmem [shape: f32[1,32], index: 6, kind: input, shape index: {}]
  %s7 = inlined_call_operand.vmem [shape: f32[1,32], index: 7, kind: input, shape index: {}]
  %s8 = inlined_call_operand.hbm [shape: f32[2,8,32], index: 8, kind: output, shape index: {}]
  %s9 = sld [smem:[#allocation0]]
  $region85: #{tpu_custom_call.1} parent=0
    _
  %s11 = ssub.s32 1, %s9
  %s12 = scalar_select 0, %s11, %s9
  $region1: #{tpu_custom_call.1} parent=0
    #allocation4 [shape = 'u8[8192]{0}', space=vmem, size = 0x2000, scoped, tag = 'input window, operand 0']
    #allocation5 [shape = 's32[2]{0}', space=sflag, size = 0x8, scoped, tag = 'scoped memory for tpu_custom_call.1']
    #allocation6 [shape = 's32[2]{0}', space=sflag, size = 0x8, scoped, tag = 'scoped memory for tpu_custom_call.1']
    #allocation7 [shape = 'u8[8192]{0}', space=vmem, size = 0x2000, scoped, tag = 'input window, operand 2, single buffered']
    #allocation8 [shape = 's32[1]{0}', space=sflag, size = 0x4, scoped, tag = 'scoped memory for tpu_custom_call.1']
    #allocation9 [shape = 'u8[8192]{0}', space=vmem, size = 0x2000, scoped, tag = 'input window, operand 4, single buffered']
    #allocation10 [shape = 'u8[8192]{0}', space=vmem, size = 0x2000, scoped, tag = 'output window, operand 0']
    %13 = vsyncpa [#allocation5], 0
    %s14 = scalar_lea.sflag [#allocation5], 1
    %15 = vsyncpa %s14, 0
    %16 = vsyncpa [#allocation8], 0
    %17 = vsyncpa [#allocation6], 0
    %s18 = scalar_lea.sflag [#allocation6], 1
    %19 = vsyncpa %s18, 0
    loop: start=0, step=1, limit=4
    $region2: #{tpu_custom_call.1} parent=1 // loop_pre_header
      _
    $region3: #{tpu_custom_call.1} parent=1 // loop_header
      %s21 = sphi 0, %s25
      %p22 = scmp.ge.s32.totalorder %s21, 4
      %s28 = sphi 0, %s40
      %s29 = sphi 0, %s36
      %s30 = sphi 0, %s28
      %s31 = sphi 0, %s29
      %s32 = sphi 0, %s30
      %s33 = sphi 0, %s31
      %s43 = sphi 0, %s45
      %s46 = sphi 0, %s43
      %s47 = sphi 0, %s46
      %s63 = sphi 0, %s47
      %s69 = sphi 0, %s71
      %s72 = sphi 0, %s69
      %s73 = sphi 0, %s72
      %s89 = sphi 0, %s73
      %s95 = sphi 0, %s97
      %s98 = sphi 0, %s95
      %s99 = sphi 0, %s98
      %s115 = sphi 0, %s99
      %s121 = sphi 0, %s123
      %s124 = sphi 0, %s121
      %s125 = sphi 0, %s124
      %s141 = sphi 0, %s125
      %s145 = sphi 0, %s145
      %s147 = sphi 0, %s145
      %s148 = sphi 0, %s147
      %s162 = sphi 0, %s148
      %s166 = sphi 0, %s166
      %s168 = sphi 0, %s166
      %s169 = sphi 0, %s168
      %s183 = sphi 0, %s169
      %s187 = sphi 0, %s187
      %s189 = sphi 0, %s187
      %s190 = sphi 0, %s189
      %s204 = sphi 0, %s190
      %s208 = sphi 0, %s208
      %s210 = sphi 0, %s208
      %s211 = sphi 0, %s210
      %s225 = sphi 0, %s211
      %s231 = sphi 0, %s233
      %s234 = sphi 0, %s231
      %s235 = sphi 0, %s234
      %s251 = sphi 0, %s235
    $region4: #{tpu_custom_call.1} parent=1 // loop_header_branch
      %24 = sbr.rel (%p22) target = $region8
    $region5: #{tpu_custom_call.1} parent=1 // loop_body
      %s26 = ssub.s32 %s21, 1
      %s27 = ssub.s32 %s21, 2
      %s34 = sadd.s32 1, %s29
      %p35 = scmp.ge.s32.totalorder %s34, 1
      %s36 = scalar_select %p35, 0, %s34
      %s37 = sadd.s32 1, %s28
      %s38 = scalar_select %p35, %s37, %s28
      %p39 = scmp.ge.s32.totalorder %s38, 2
      %s40 = scalar_select %p39, 0, %s38
      %s41 = ssub.s32 %s28, %s40
      %p42 = scmp.eq.s32.totalorder %s41, 0
      %s44 = sadd.s32 %s43, 1
      %s45 = scalar_select %p42, %s43, %s44
      %p48 = pneg %p42
      %p49 = scmp.eq.s32.totalorder %s21, 1
      %p50 = por %p48, %p49
      %p51 = scmp.ne.s32.totalorder %s43, %s46
      %p52 = scmp.eq.s32.totalorder %s21, 0
      %p53 = por %p51, %p52
      %p54 = scmp.ne.s32.totalorder %s43, %s46
      %p55 = scmp.eq.s32.totalorder %s26, 1
      %p56 = por %p54, %p55
      %p57 = scmp.ne.s32.totalorder %s46, %s47
      %p58 = scmp.eq.s32.totalorder %s26, 0
      %p59 = por %p57, %p58
      %p60 = scmp.ne.s32.totalorder %s46, %s47
      %p61 = scmp.eq.s32.totalorder %s27, 1
      %p62 = por %p60, %p61
      %p64 = scmp.ne.s32.totalorder %s47, %s63
      %p65 = scmp.eq.s32.totalorder %s27, 0
      %p66 = por %p64, %p65
      %s67 = ssub.s32 %s28, %s40
      %p68 = scmp.eq.s32.totalorder %s67, 0
      %s70 = sadd.s32 %s69, 1
      %s71 = scalar_select %p68, %s69, %s70
      %p74 = pneg %p68
      %p75 = scmp.eq.s32.totalorder %s21, 1
      %p76 = por %p74, %p75
      %p77 = scmp.ne.s32.totalorder %s69, %s72
      %p78 = scmp.eq.s32.totalorder %s21, 0
      %p79 = por %p77, %p78
      %p80 = scmp.ne.s32.totalorder %s69, %s72
      %p81 = scmp.eq.s32.totalorder %s26, 1
      %p82 = por %p80, %p81
      %p83 = scmp.ne.s32.totalorder %s72, %s73
      %p84 = scmp.eq.s32.totalorder %s26, 0
      %p85 = por %p83, %p84
      %p86 = scmp.ne.s32.totalorder %s72, %s73
      %p87 = scmp.eq.s32.totalorder %s27, 1
      %p88 = por %p86, %p87
      %p90 = scmp.ne.s32.totalorder %s73, %s89
      %p91 = scmp.eq.s32.totalorder %s27, 0
      %p92 = por %p90, %p91
      %s93 = ssub.s32 %s29, %s36
      %p94 = scmp.eq.s32.totalorder %s93, 0
      %s96 = sadd.s32 %s95, 1
      %s97 = scalar_select %p94, %s95, %s96
      %p100 = pneg %p94
      %p101 = scmp.eq.s32.totalorder %s21, 1
      %p102 = por %p100, %p101
      %p103 = scmp.ne.s32.totalorder %s95, %s98
      %p104 = scmp.eq.s32.totalorder %s21, 0
      %p105 = por %p103, %p104
      %p106 = scmp.ne.s32.totalorder %s95, %s98
      %p107 = scmp.eq.s32.totalorder %s26, 1
      %p108 = por %p106, %p107
      %p109 = scmp.ne.s32.totalorder %s98, %s99
      %p110 = scmp.eq.s32.totalorder %s26, 0
      %p111 = por %p109, %p110
      %p112 = scmp.ne.s32.totalorder %s98, %s99
      %p113 = scmp.eq.s32.totalorder %s27, 1
      %p114 = por %p112, %p113
      %p116 = scmp.ne.s32.totalorder %s99, %s115
      %p117 = scmp.eq.s32.totalorder %s27, 0
      %p118 = por %p116, %p117
      %s119 = ssub.s32 %s29, %s36
      %p120 = scmp.eq.s32.totalorder %s119, 0
      %s122 = sadd.s32 %s121, 1
      %s123 = scalar_select %p120, %s121, %s122
      %p126 = pneg %p120
      %p127 = scmp.eq.s32.totalorder %s21, 1
      %p128 = por %p126, %p127
      %p129 = scmp.ne.s32.totalorder %s121, %s124
      %p130 = scmp.eq.s32.totalorder %s21, 0
      %p131 = por %p129, %p130
      %p132 = scmp.ne.s32.totalorder %s121, %s124
      %p133 = scmp.eq.s32.totalorder %s26, 1
      %p134 = por %p132, %p133
      %p135 = scmp.ne.s32.totalorder %s124, %s125
      %p136 = scmp.eq.s32.totalorder %s26, 0
      %p137 = por %p135, %p136
      %p138 = scmp.ne.s32.totalorder %s124, %s125
      %p139 = scmp.eq.s32.totalorder %s27, 1
      %p140 = por %p138, %p139
      %p142 = scmp.ne.s32.totalorder %s125, %s141
      %p143 = scmp.eq.s32.totalorder %s27, 0
      %p144 = por %p142, %p143
      %s146 = sadd.s32 %s145, 1
      %p149 = scmp.eq.s32.totalorder %s21, 1
      %p150 = scmp.ne.s32.totalorder %s145, %s147
      %p151 = scmp.eq.s32.totalorder %s21, 0
      %p152 = por %p150, %p151
      %p153 = scmp.ne.s32.totalorder %s145, %s147
      %p154 = scmp.eq.s32.totalorder %s26, 1
      %p155 = por %p153, %p154
      %p156 = scmp.ne.s32.totalorder %s147, %s148
      %p157 = scmp.eq.s32.totalorder %s26, 0
      %p158 = por %p156, %p157
      %p159 = scmp.ne.s32.totalorder %s147, %s148
      %p160 = scmp.eq.s32.totalorder %s27, 1
      %p161 = por %p159, %p160
      %p163 = scmp.ne.s32.totalorder %s148, %s162
      %p164 = scmp.eq.s32.totalorder %s27, 0
      %p165 = por %p163, %p164
      %s167 = sadd.s32 %s166, 1
      %p170 = scmp.eq.s32.totalorder %s21, 1
      %p171 = scmp.ne.s32.totalorder %s166, %s168
      %p172 = scmp.eq.s32.totalorder %s21, 0
      %p173 = por %p171, %p172
      %p174 = scmp.ne.s32.totalorder %s166, %s168
      %p175 = scmp.eq.s32.totalorder %s26, 1
      %p176 = por %p174, %p175
      %p177 = scmp.ne.s32.totalorder %s168, %s169
      %p178 = scmp.eq.s32.totalorder %s26, 0
      %p179 = por %p177, %p178
      %p180 = scmp.ne.s32.totalorder %s168, %s169
      %p181 = scmp.eq.s32.totalorder %s27, 1
      %p182 = por %p180, %p181
      %p184 = scmp.ne.s32.totalorder %s169, %s183
      %p185 = scmp.eq.s32.totalorder %s27, 0
      %p186 = por %p184, %p185
      %s188 = sadd.s32 %s187, 1
      %p191 = scmp.eq.s32.totalorder %s21, 1
      %p192 = scmp.ne.s32.totalorder %s187, %s189
      %p193 = scmp.eq.s32.totalorder %s21, 0
      %p194 = por %p192, %p193
      %p195 = scmp.ne.s32.totalorder %s187, %s189
      %p196 = scmp.eq.s32.totalorder %s26, 1
      %p197 = por %p195, %p196
      %p198 = scmp.ne.s32.totalorder %s189, %s190
      %p199 = scmp.eq.s32.totalorder %s26, 0
      %p200 = por %p198, %p199
      %p201 = scmp.ne.s32.totalorder %s189, %s190
      %p202 = scmp.eq.s32.totalorder %s27, 1
      %p203 = por %p201, %p202
      %p205 = scmp.ne.s32.totalorder %s190, %s204
      %p206 = scmp.eq.s32.totalorder %s27, 0
      %p207 = por %p205, %p206
      %s209 = sadd.s32 %s208, 1
      %p212 = scmp.eq.s32.totalorder %s21, 1
      %p213 = scmp.ne.s32.totalorder %s208, %s210
      %p214 = scmp.eq.s32.totalorder %s21, 0
      %p215 = por %p213, %p214
      %p216 = scmp.ne.s32.totalorder %s208, %s210
      %p217 = scmp.eq.s32.totalorder %s26, 1
      %p218 = por %p216, %p217
      %p219 = scmp.ne.s32.totalorder %s210, %s211
      %p220 = scmp.eq.s32.totalorder %s26, 0
      %p221 = por %p219, %p220
      %p222 = scmp.ne.s32.totalorder %s210, %s211
      %p223 = scmp.eq.s32.totalorder %s27, 1
      %p224 = por %p222, %p223
      %p226 = scmp.ne.s32.totalorder %s211, %s225
      %p227 = scmp.eq.s32.totalorder %s27, 0
      %p228 = por %p226, %p227
      %s229 = ssub.s32 %s28, %s40
      %p230 = scmp.eq.s32.totalorder %s229, 0
      %s232 = sadd.s32 %s231, 1
      %s233 = scalar_select %p230, %s231, %s232
      %p236 = pneg %p230
      %p237 = scmp.eq.s32.totalorder %s21, 1
      %p238 = por %p236, %p237
      %p239 = scmp.ne.s32.totalorder %s231, %s234
      %p240 = scmp.eq.s32.totalorder %s21, 0
      %p241 = por %p239, %p240
      %p242 = scmp.ne.s32.totalorder %s231, %s234
      %p243 = scmp.eq.s32.totalorder %s26, 1
      %p244 = por %p242, %p243
      %p245 = scmp.ne.s32.totalorder %s234, %s235
      %p246 = scmp.eq.s32.totalorder %s26, 0
      %p247 = por %p245, %p246
      %p248 = scmp.ne.s32.totalorder %s234, %s235
      %p249 = scmp.eq.s32.totalorder %s27, 1
      %p250 = por %p248, %p249
      %p252 = scmp.ne.s32.totalorder %s235, %s251
      %p253 = scmp.eq.s32.totalorder %s27, 0
      %p254 = por %p252, %p253
      %p255 = scmp.le.s32.totalorder 1, %s21
      %p256 = scmp.lt.s32.totalorder %s21, 3
      %p257 = pnand %p255, %p256
      %p258 = pneg %p257
      // Predicated region
      $region9: #{tpu_custom_call.1} parent=5 // pred_check
        _
      $region10: #{tpu_custom_call.1} parent=5 // pred_check_branch
        %260 = sbr.rel (%p257) target = $region12
      $region11: #{tpu_custom_call.1} parent=5 // pred_region
        %s261 = ssub.s32 %s21, 1
        // Predicated region
        $region13: #{tpu_custom_call.1} parent=11 // pred_check
          %p262 = pneg %p111
        $region14: #{tpu_custom_call.1} parent=11 // pred_check_branch
          %264 = sbr.rel (%p262) target = $region16
        $region15: #{tpu_custom_call.1} parent=11 // pred_region
          %s266 = ssub.s32 256, 256
          %267 = vsyncadd [#allocation8], %s266
          %s268 = smul.addr %s31, 4
          %s269 = smul.addr %s268, 64
          %s270 = scalar_lea.hbm %s2, %s269
          %s271 = sshll.u32 [#allocation7], 4
          %s272 = int_to_ptr.vmem [resolvable:$true] %s271
          %277 = dma.hbm_to_vmem [thread:$0]  %s270, 256, %s272, [#allocation8], 64, 64, 4
        $region16: #{tpu_custom_call.1} parent=11 // pred_fallthru
          _
        // Predicated region
        $region17: #{tpu_custom_call.1} parent=11 // pred_check
          %p278 = pneg %p137
        $region18: #{tpu_custom_call.1} parent=11 // pred_check_branch
          %280 = sbr.rel (%p278) target = $region20
        $region19: #{tpu_custom_call.1} parent=11 // pred_region
          %p281 = scmp.lt.s32.totalorder %s31, 0
          %s282 = scalar_select %p281, %s31, 0
          %s283 = scalar_lea.vmem %s3, %s282
        $region20: #{tpu_custom_call.1} parent=11 // pred_fallthru
          _
        // Predicated region
        $region21: #{tpu_custom_call.1} parent=11 // pred_check
          %p284 = pneg %p158
        $region22: #{tpu_custom_call.1} parent=11 // pred_check_branch
          %286 = sbr.rel (%p284) target = $region24
        $region23: #{tpu_custom_call.1} parent=11 // pred_region
          %s288 = ssub.s32 256, 256
          %289 = vsyncadd [#allocation8], %s288
          %s290 = sshll.u32 [#allocation9], 4
          %s291 = int_to_ptr.vmem [resolvable:$true] %s290
          %296 = dma.hbm_to_vmem [thread:$0]  %s4, 256, %s291, [#allocation8], 64, 64, 4
        $region24: #{tpu_custom_call.1} parent=11 // pred_fallthru
          _
        // Predicated region
        $region25: #{tpu_custom_call.1} parent=11 // pred_check
          %p297 = pneg %p179
        $region26: #{tpu_custom_call.1} parent=11 // pred_check_branch
          %299 = sbr.rel (%p297) target = $region28
        $region27: #{tpu_custom_call.1} parent=11 // pred_region
          _
        $region28: #{tpu_custom_call.1} parent=11 // pred_fallthru
          _
        // Predicated region
        $region29: #{tpu_custom_call.1} parent=11 // pred_check
          %p300 = pneg %p200
        $region30: #{tpu_custom_call.1} parent=11 // pred_check_branch
          %302 = sbr.rel (%p300) target = $region32
        $region31: #{tpu_custom_call.1} parent=11 // pred_region
          _
        $region32: #{tpu_custom_call.1} parent=11 // pred_fallthru
          _
        // Predicated region
        $region33: #{tpu_custom_call.1} parent=11 // pred_check
          %p303 = pneg %p221
        $region34: #{tpu_custom_call.1} parent=11 // pred_check_branch
          %305 = sbr.rel (%p303) target = $region36
        $region35: #{tpu_custom_call.1} parent=11 // pred_region
          _
        $region36: #{tpu_custom_call.1} parent=11 // pred_fallthru
          _
      $region12: #{tpu_custom_call.1} parent=5 // pred_fallthru
        _
      %p306 = scmp.lt.s32.totalorder %s21, 2
      // Predicated region
      $region37: #{tpu_custom_call.1} parent=5 // pred_check
        %p307 = pneg %p306
      $region38: #{tpu_custom_call.1} parent=5 // pred_check_branch
        %309 = sbr.rel (%p307) target = $region40
      $region39: #{tpu_custom_call.1} parent=5 // pred_region
        // Predicated region
        $region41: #{tpu_custom_call.1} parent=39 // pred_check
          %p310 = pneg %p53
        $region42: #{tpu_custom_call.1} parent=39 // pred_check_branch
          %312 = sbr.rel (%p310) target = $region44
        $region43: #{tpu_custom_call.1} parent=39 // pred_region
          %s313 = sand.u32 %s43, 1
          %s314 = scalar_lea.sflag [#allocation5], %s313
          %s315 = sand.u32 %s43, 1
          %s316 = smul.addr %s315, 8
          %s317 = scalar_lea.vmem [#allocation4], %s316
          %s319 = ssub.s32 128, 128
          %320 = vsyncadd %s314, %s319
          %s321 = smul.addr %s28, 128
          %s322 = scalar_lea.hbm %s0, %s321
          %s324 = sshll.u32 %s317, 4
          %s325 = int_to_ptr.vmem [resolvable:$true] %s324
          %327 = dma.hbm_to_vmem [thread:$0]  %s322, 128, %s325, %s314
        $region44: #{tpu_custom_call.1} parent=39 // pred_fallthru
          _
        // Predicated region
        $region45: #{tpu_custom_call.1} parent=39 // pred_check
          %p328 = pneg %p79
        $region46: #{tpu_custom_call.1} parent=39 // pred_check_branch
          %330 = sbr.rel (%p328) target = $region48
        $region47: #{tpu_custom_call.1} parent=39 // pred_region
          %p331 = scmp.lt.s32.totalorder %s28, 1
          %s332 = scalar_select %p331, %s28, 1
          %s333 = scalar_lea.vmem %s1, %s332
        $region48: #{tpu_custom_call.1} parent=39 // pred_fallthru
          _
      $region40: #{tpu_custom_call.1} parent=5 // pred_fallthru
        _
      %p334 = scmp.le.s32.totalorder 1, %s21
      %p335 = scmp.lt.s32.totalorder %s21, 3
      %p336 = pnand %p334, %p335
      %p337 = pneg %p336
      // Predicated region
      $region49: #{tpu_custom_call.1} parent=5 // pred_check
        _
      $region50: #{tpu_custom_call.1} parent=5 // pred_check_branch
        %339 = sbr.rel (%p336) target = $region52
      $region51: #{tpu_custom_call.1} parent=5 // pred_region
        %s340 = ssub.s32 %s21, 1
        %s341 = sand.u32 %s46, 1
        %s342 = scalar_lea.sflag [#allocation5], %s341
        %s343 = sand.u32 %s46, 1
        %s344 = smul.addr %s343, 8
        %s345 = scalar_lea.vmem [#allocation4], %s344
        // Predicated region
        $region53: #{tpu_custom_call.1} parent=51 // pred_check
          %p346 = pneg %p59
        $region54: #{tpu_custom_call.1} parent=51 // pred_check_branch
          %348 = sbr.rel (%p346) target = $region56
        $region55: #{tpu_custom_call.1} parent=51 // pred_region
          %349 = dma.done %s342, 128
        $region56: #{tpu_custom_call.1} parent=51 // pred_fallthru
          _
        // Predicated region
        $region57: #{tpu_custom_call.1} parent=51 // pred_check
          %p350 = pneg %p111
        $region58: #{tpu_custom_call.1} parent=51 // pred_check_branch
          %352 = sbr.rel (%p350) target = $region60
        $region59: #{tpu_custom_call.1} parent=51 // pred_region
          %353 = dma.done [#allocation8], 256
        $region60: #{tpu_custom_call.1} parent=51 // pred_fallthru
          _
        // Predicated region
        $region61: #{tpu_custom_call.1} parent=51 // pred_check
          %p354 = pneg %p158
        $region62: #{tpu_custom_call.1} parent=51 // pred_check_branch
          %356 = sbr.rel (%p354) target = $region64
        $region63: #{tpu_custom_call.1} parent=51 // pred_region
          %357 = dma.done [#allocation8], 256
        $region64: #{tpu_custom_call.1} parent=51 // pred_fallthru
          _
        %s358 = sand.u32 %s46, 1
        %s359 = scalar_lea.sflag [#allocation5], %s358
        %s360 = sand.u32 %s46, 1
        %s361 = smul.addr %s360, 8
        %s362 = scalar_lea.vmem [#allocation4], %s361
        %p363 = pneg %p59
        %p364 = pneg %p56
        %p365 = scmp.lt.s32.totalorder %s30, 1
        %s366 = scalar_select %p365, %s30, 1
        %s367 = scalar_lea.vmem %s1, %s366
        %p368 = pneg %p85
        %p369 = pneg %p82
        %p370 = pneg %p111
        %p371 = pneg %p108
        %p372 = scmp.lt.s32.totalorder %s31, 0
        %s373 = scalar_select %p372, %s31, 0
        %s374 = scalar_lea.vmem %s3, %s373
        %p375 = pneg %p137
        %p376 = pneg %p134
        %p377 = pneg %p158
        %p378 = pneg %p155
        %p379 = pneg %p179
        %p380 = pneg %p176
        %p381 = pneg %p200
        %p382 = pneg %p197
        %p383 = pneg %p221
        %p384 = pneg %p218
        %p385 = pneg %p247
        %p386 = pneg %p244
        %s387 = sand.u32 %s234, 1
        %s388 = scalar_lea.sflag [#allocation6], %s387
        %s389 = sand.u32 %s234, 1
        %s390 = smul.addr %s389, 8
        %s391 = scalar_lea.vmem [#allocation10], %s390
        %p392 = scmp.lt.s32.totalorder %s30, 1
        %s393 = scalar_select %p392, %s30, 1
        %s394 = scalar_lea.vmem %s1, %s393
        %p395 = scmp.lt.s32.totalorder %s31, 0
        %s396 = scalar_select %p395, %s31, 0
        %s397 = scalar_lea.vmem %s3, %s396
        %p399 = scmp.eq.s32.totalorder %s31, 0
        // Predicated region
        $region65: #{tpu_custom_call.1} parent=51 // pred_check
          %p400 = pneg %p399
        $region66: #{tpu_custom_call.1} parent=51 // pred_check_branch
          %402 = sbr.rel (%p400) target = $region68
        $region67: #{tpu_custom_call.1} parent=51 // pred_region
          %v403 = vld [vmem:[%s345] sm:$0xff]
          %v404 = vpack.c.bf16 %v403, %v403
          %vm405 = vcmask 257024
          %406 = vst.msk [vmem:[#allocation2] sm:$0xf] %vm405, %v404
        $region68: #{tpu_custom_call.1} parent=51 // pred_fallthru
          _
        %v407 = vld [vmem:[#allocation2] sm:$0xf]
        %v408 = vld [vmem:[%s394] sm:$0x1]
        %v409 = vld [vmem:[#allocation7] sm:$0xf]
        %v410 = vld [vmem:[#allocation7 + $0x4] sm:$0xf]
        %v411 = vld [vmem:[#allocation7 + $0x8] sm:$0xf]
        %v412 = vld [vmem:[#allocation7 + $0xc] sm:$0xf]
        %v413 = vld [vmem:[%s397] sm:$0x1]
        %v415 = vlaneseq
        %v416 = vshrl.u32 %v415, 7
        %v417 = vsub.s32 0, %v416
        %v418 = vrot.slane %v413, %v417
        %v424 = vunpack.c.l.b16 %v409
        %v425 = vunpack.c.l.b16 %v410
        %v426 = vunpack.c.l.b16 %v411
        %v427 = vunpack.c.l.b16 %v412
        %v428 = vpack.c.b16 %v425, %v424
        %v429 = vpack.c.b16 %v427, %v426
        %vm432 = vcmask 261120
        %v434 = vsel %vm432, %v407, 0
        %436 = vmatprep.subr.bf16.mxu0 0
        %437 = vmatpush1.bf16.msra.mxu0 %v428
        %438 = vmatprep.subr.bf16.mxu0 0
        %439 = vmatpush1.bf16.msra.mxu0 %v429
        %440 = vmatprep.subr.bf16.mxu0 0
        %441 = vmatpush1.bf16.msra.mxu0 0
        %442 = vmatprep.subr.bf16.mxu0 0
        %443 = vmatpush1.bf16.msra.mxu0 0
        %444 = vmatprep.subr.bf16.mxu0 0
        %445 = vmatpush1.bf16.msra.mxu0 0
        %446 = vmatprep.subr.bf16.mxu0 0
        %447 = vmatpush1.bf16.msra.mxu0 0
        %448 = vmatprep.subr.bf16.mxu0 0
        %449 = vmatpush1.bf16.msra.mxu0 0
        %450 = vmatprep.subr.bf16.mxu0 0
        %451 = vmatpush1.bf16.msra.mxu0 0
        %452 = vmatprep.subr.bf16.mxu0 0
        %453 = vmatpush1.bf16.msra.mxu0 0
        %454 = vmatprep.subr.bf16.mxu0 0
        %455 = vmatpush1.bf16.msra.mxu0 0
        %456 = vmatprep.subr.bf16.mxu0 0
        %457 = vmatpush1.bf16.msra.mxu0 0
        %458 = vmatprep.subr.bf16.mxu0 0
        %459 = vmatpush1.bf16.msra.mxu0 0
        %460 = vmatprep.subr.bf16.mxu0 0
        %461 = vmatpush1.bf16.msra.mxu0 0
        %462 = vmatprep.subr.bf16.mxu0 0
        %463 = vmatpush1.bf16.msra.mxu0 0
        %464 = vmatprep.subr.bf16.mxu0 0
        %465 = vmatpush1.bf16.msra.mxu0 0
        %466 = vmatprep.subr.bf16.mxu0 0
        %467 = vmatpush1.bf16.msra.mxu0 0
        %468 = vmatprep.mubr.bf16.mxu0 0
        %469 = vmatmul.mubr.bf16.gmra.mrb[0].mxu0 %v434
        %v470 = vpop.f32.mrb[0].mxu0
        %v471 = vadd.f32 %v418, %v470
        %v472 = vpop.f32.mrb[0].mxu0
        %v473 = vpop.f32.mrb[0].mxu0
        %v474 = vpop.f32.mrb[0].mxu0
        %475 = vdwg.mxu0
        %v476 = vmul.f32 %v471, 0.35355338
        %v477 = vpack.c.bf16 %v476, %v476
        %v478 = vpack.c.bf16 %v471, %v471
        %v480 = vlaneseq
        %v481 = vshrl.u32 %v480, 7
        %v482 = vsub.s32 0, %v481
        %v483 = vrot.slane %v408, %v482
        %486 = vrot.lane.b32.xlu0 %v478, 96
        %v487 = vpop.permute.xlu0 %486
        %vm488 = vcmask 64512
        %v490 = vsel %vm488, %v477, 0
        %v493 = vsel %vm488, %v487, 0
        %495 = vmatprep.subr.bf16.mxu0 0
        %496 = vmatpush1.bf16.xpose.msra.mxu0 %v493
        %497 = vmatprep.subr.bf16.mxu0 0
        %498 = vmatpush1.bf16.xpose.msra.mxu0 0
        %499 = vmatprep.subr.bf16.mxu0 0
        %500 = vmatpush1.bf16.xpose.msra.mxu0 0
        %501 = vmatprep.subr.bf16.mxu0 0
        %502 = vmatpush1.bf16.xpose.msra.mxu0 0
        %503 = vmatprep.subr.bf16.mxu0 0
        %504 = vmatpush1.bf16.xpose.msra.mxu0 0
        %505 = vmatprep.subr.bf16.mxu0 0
        %506 = vmatpush1.bf16.xpose.msra.mxu0 0
        %507 = vmatprep.subr.bf16.mxu0 0
        %508 = vmatpush1.bf16.xpose.msra.mxu0 0
        %509 = vmatprep.subr.bf16.mxu0 0
        %510 = vmatpush1.bf16.xpose.msra.mxu0 0
        %511 = vmatprep.subr.bf16.mxu0 0
        %512 = vmatpush1.bf16.xpose.msra.mxu0 0
        %513 = vmatprep.subr.bf16.mxu0 0
        %514 = vmatpush1.bf16.xpose.msra.mxu0 0
        %515 = vmatprep.subr.bf16.mxu0 0
        %516 = vmatpush1.bf16.xpose.msra.mxu0 0
        %517 = vmatprep.subr.bf16.mxu0 0
        %518 = vmatpush1.bf16.xpose.msra.mxu0 0
        %519 = vmatprep.subr.bf16.mxu0 0
        %520 = vmatpush1.bf16.xpose.msra.mxu0 0
        %521 = vmatprep.subr.bf16.mxu0 0
        %522 = vmatpush1.bf16.xpose.msra.mxu0 0
        %523 = vmatprep.subr.bf16.mxu0 0
        %524 = vmatpush1.bf16.xpose.msra.mxu0 0
        %525 = vmatprep.subr.bf16.mxu0 0
        %526 = vmatpush1.bf16.xpose.msra.mxu0 0
        %527 = vmatprep.mubr.bf16.mxu0 0
        %528 = vmatmul.mubr.bf16.gmra.mrb[0].mxu0 %v490
        %v529 = vpop.f32.mrb[0].mxu0
        %v530 = vadd.f32 %v483, %v529
        %v531 = vpop.f32.mrb[0].mxu0
        %v532 = vpop.f32.mrb[0].mxu0
        %v533 = vpop.f32.mrb[0].mxu0
        %534 = vdwg.mxu0
        %v535 = vsel %vm488, %v530, -inf
        %536 = vmax.xlane.f32.xlu0 %v535
        %v537 = vpop.xlane.xlu0 %536
        %v538 = vsub.f32 %v530, %v537
        %v539 = vmul.f32 %v538, 1.442695
        %v540 = vpow.pop %v539
        %v541 = vsel %vm488, %v540, 0.0
        %542 = vadd.xlane.f32.xlu0 %v541
        %v543 = vpop.xlane.xlu0 %542
        %v544 = vrcp.pop %v543
        %v545 = vmul.f32 %v540, %v544
        %v546 = vpack.c.bf16 %v545, %v545
        %547 = vrot.lane.b32.xlu0 %v478, 64
        %v548 = vpop.permute.xlu0 %547
        %v550 = vsel %vm488, %v546, 0
        %vm552 = vcmask 1043456
        %v554 = vsel %vm552, %v548, 0
        %556 = vmatprep.subr.bf16.mxu0 0
        %557 = vmatpush1.bf16.msra.mxu0 %v554
        %558 = vmatprep.subr.bf16.mxu0 0
        %559 = vmatpush1.bf16.msra.mxu0 0
        %560 = vmatprep.subr.bf16.mxu0 0
        %561 = vmatpush1.bf16.msra.mxu0 0
        %562 = vmatprep.subr.bf16.mxu0 0
        %563 = vmatpush1.bf16.msra.mxu0 0
        %564 = vmatprep.subr.bf16.mxu0 0
        %565 = vmatpush1.bf16.msra.mxu0 0
        %566 = vmatprep.subr.bf16.mxu0 0
        %567 = vmatpush1.bf16.msra.mxu0 0
        %568 = vmatprep.subr.bf16.mxu0 0
        %569 = vmatpush1.bf16.msra.mxu0 0
        %570 = vmatprep.subr.bf16.mxu0 0
        %571 = vmatpush1.bf16.msra.mxu0 0
        %572 = vmatprep.subr.bf16.mxu0 0
        %573 = vmatpush1.bf16.msra.mxu0 0
        %574 = vmatprep.subr.bf16.mxu0 0
        %575 = vmatpush1.bf16.msra.mxu0 0
        %576 = vmatprep.subr.bf16.mxu0 0
        %577 = vmatpush1.bf16.msra.mxu0 0
        %578 = vmatprep.subr.bf16.mxu0 0
        %579 = vmatpush1.bf16.msra.mxu0 0
        %580 = vmatprep.subr.bf16.mxu0 0
        %581 = vmatpush1.bf16.msra.mxu0 0
        %582 = vmatprep.subr.bf16.mxu0 0
        %583 = vmatpush1.bf16.msra.mxu0 0
        %584 = vmatprep.subr.bf16.mxu0 0
        %585 = vmatpush1.bf16.msra.mxu0 0
        %586 = vmatprep.subr.bf16.mxu0 0
        %587 = vmatpush1.bf16.msra.mxu0 0
        %588 = vmatprep.mubr.bf16.mxu0 0
        %589 = vmatmul.mubr.bf16.gmra.mrb[0].mxu0 %v550
        %v590 = vpop.f32.mrb[0].mxu0
        %v591 = vadd.f32 0.0, %v590
        %v592 = vpop.f32.mrb[0].mxu0
        %v593 = vpop.f32.mrb[0].mxu0
        %v594 = vpop.f32.mrb[0].mxu0
        %595 = vdwg.mxu0
        %597 = vrot.lane.b32.xlu0 %v477, 120
        %v598 = vpop.permute.xlu0 %597
        %599 = vrot.lane.b32.xlu0 %v478, 88
        %v600 = vpop.permute.xlu0 %599
        %v602 = vsel %vm488, %v598, 0
        %v605 = vsel %vm488, %v600, 0
        %607 = vmatprep.subr.bf16.mxu0 0
        %608 = vmatpush1.bf16.xpose.msra.mxu0 %v605
        %609 = vmatprep.subr.bf16.mxu0 0
        %610 = vmatpush1.bf16.xpose.msra.mxu0 0
        %611 = vmatprep.subr.bf16.mxu0 0
        %612 = vmatpush1.bf16.xpose.msra.mxu0 0
        %613 = vmatprep.subr.bf16.mxu0 0
        %614 = vmatpush1.bf16.xpose.msra.mxu0 0
        %615 = vmatprep.subr.bf16.mxu0 0
        %616 = vmatpush1.bf16.xpose.msra.mxu0 0
        %617 = vmatprep.subr.bf16.mxu0 0
        %618 = vmatpush1.bf16.xpose.msra.mxu0 0
        %619 = vmatprep.subr.bf16.mxu0 0
        %620 = vmatpush1.bf16.xpose.msra.mxu0 0
        %621 = vmatprep.subr.bf16.mxu0 0
        %622 = vmatpush1.bf16.xpose.msra.mxu0 0
        %623 = vmatprep.subr.bf16.mxu0 0
        %624 = vmatpush1.bf16.xpose.msra.mxu0 0
        %625 = vmatprep.subr.bf16.mxu0 0
        %626 = vmatpush1.bf16.xpose.msra.mxu0 0
        %627 = vmatprep.subr.bf16.mxu0 0
        %628 = vmatpush1.bf16.xpose.msra.mxu0 0
        %629 = vmatprep.subr.bf16.mxu0 0
        %630 = vmatpush1.bf16.xpose.msra.mxu0 0
        %631 = vmatprep.subr.bf16.mxu0 0
        %632 = vmatpush1.bf16.xpose.msra.mxu0 0
        %633 = vmatprep.subr.bf16.mxu0 0
        %634 = vmatpush1.bf16.xpose.msra.mxu0 0
        %635 = vmatprep.subr.bf16.mxu0 0
        %636 = vmatpush1.bf16.xpose.msra.mxu0 0
        %637 = vmatprep.subr.bf16.mxu0 0
        %638 = vmatpush1.bf16.xpose.msra.mxu0 0
        %639 = vmatprep.mubr.bf16.mxu0 0
        %640 = vmatmul.mubr.bf16.gmra.mrb[0].mxu0 %v602
        %v641 = vpop.f32.mrb[0].mxu0
        %v642 = vadd.f32 %v483, %v641
        %v643 = vpop.f32.mrb[0].mxu0
        %v644 = vpop.f32.mrb[0].mxu0
        %v645 = vpop.f32.mrb[0].mxu0
        %646 = vdwg.mxu0
        %v647 = vsel %vm488, %v642, -inf
        %648 = vmax.xlane.f32.xlu0 %v647
        %v649 = vpop.xlane.xlu0 %648
        %v650 = vsub.f32 %v642, %v649
        %v651 = vmul.f32 %v650, 1.442695
        %v652 = vpow.pop %v651
        %v653 = vsel %vm488, %v652, 0.0
        %654 = vadd.xlane.f32.xlu0 %v653
        %v655 = vpop.xlane.xlu0 %654
        %v656 = vrcp.pop %v655
        %v657 = vmul.f32 %v652, %v656
        %v658 = vpack.c.bf16 %v657, %v657
        %659 = vrot.lane.b32.xlu0 %v478, 56
        %v660 = vpop.permute.xlu0 %659
        %v662 = vsel %vm488, %v658, 0
        %v665 = vsel %vm552, %v660, 0
        %667 = vmatprep.subr.bf16.mxu0 0
        %668 = vmatpush1.bf16.msra.mxu0 %v665
        %669 = vmatprep.subr.bf16.mxu0 0
        %670 = vmatpush1.bf16.msra.mxu0 0
        %671 = vmatprep.subr.bf16.mxu0 0
        %672 = vmatpush1.bf16.msra.mxu0 0
        %673 = vmatprep.subr.bf16.mxu0 0
        %674 = vmatpush1.bf16.msra.mxu0 0
        %675 = vmatprep.subr.bf16.mxu0 0
        %676 = vmatpush1.bf16.msra.mxu0 0
        %677 = vmatprep.subr.bf16.mxu0 0
        %678 = vmatpush1.bf16.msra.mxu0 0
        %679 = vmatprep.subr.bf16.mxu0 0
        %680 = vmatpush1.bf16.msra.mxu0 0
        %681 = vmatprep.subr.bf16.mxu0 0
        %682 = vmatpush1.bf16.msra.mxu0 0
        %683 = vmatprep.subr.bf16.mxu0 0
        %684 = vmatpush1.bf16.msra.mxu0 0
        %685 = vmatprep.subr.bf16.mxu0 0
        %686 = vmatpush1.bf16.msra.mxu0 0
        %687 = vmatprep.subr.bf16.mxu0 0
        %688 = vmatpush1.bf16.msra.mxu0 0
        %689 = vmatprep.subr.bf16.mxu0 0
        %690 = vmatpush1.bf16.msra.mxu0 0
        %691 = vmatprep.subr.bf16.mxu0 0
        %692 = vmatpush1.bf16.msra.mxu0 0
        %693 = vmatprep.subr.bf16.mxu0 0
        %694 = vmatpush1.bf16.msra.mxu0 0
        %695 = vmatprep.subr.bf16.mxu0 0
        %696 = vmatpush1.bf16.msra.mxu0 0
        %697 = vmatprep.subr.bf16.mxu0 0
        %698 = vmatpush1.bf16.msra.mxu0 0
        %699 = vmatprep.mubr.bf16.mxu0 0
        %700 = vmatmul.mubr.bf16.gmra.mrb[0].mxu0 %v662
        %v701 = vpop.f32.mrb[0].mxu0
        %v702 = vadd.f32 0.0, %v701
        %v703 = vpop.f32.mrb[0].mxu0
        %v704 = vpop.f32.mrb[0].mxu0
        %v705 = vpop.f32.mrb[0].mxu0
        %706 = vdwg.mxu0
        %707 = vrot.lane.b32.xlu0 %v477, 112
        %v708 = vpop.permute.xlu0 %707
        %709 = vrot.lane.b32.xlu0 %v478, 80
        %v710 = vpop.permute.xlu0 %709
        %v712 = vsel %vm488, %v708, 0
        %v715 = vsel %vm488, %v710, 0
        %717 = vmatprep.subr.bf16.mxu0 0
        %718 = vmatpush1.bf16.xpose.msra.mxu0 %v715
        %719 = vmatprep.subr.bf16.mxu0 0
        %720 = vmatpush1.bf16.xpose.msra.mxu0 0
        %721 = vmatprep.subr.bf16.mxu0 0
        %722 = vmatpush1.bf16.xpose.msra.mxu0 0
        %723 = vmatprep.subr.bf16.mxu0 0
        %724 = vmatpush1.bf16.xpose.msra.mxu0 0
        %725 = vmatprep.subr.bf16.mxu0 0
        %726 = vmatpush1.bf16.xpose.msra.mxu0 0
        %727 = vmatprep.subr.bf16.mxu0 0
        %728 = vmatpush1.bf16.xpose.msra.mxu0 0
        %729 = vmatprep.subr.bf16.mxu0 0
        %730 = vmatpush1.bf16.xpose.msra.mxu0 0
        %731 = vmatprep.subr.bf16.mxu0 0
        %732 = vmatpush1.bf16.xpose.msra.mxu0 0
        %733 = vmatprep.subr.bf16.mxu0 0
        %734 = vmatpush1.bf16.xpose.msra.mxu0 0
        %735 = vmatprep.subr.bf16.mxu0 0
        %736 = vmatpush1.bf16.xpose.msra.mxu0 0
        %737 = vmatprep.subr.bf16.mxu0 0
        %738 = vmatpush1.bf16.xpose.msra.mxu0 0
        %739 = vmatprep.subr.bf16.mxu0 0
        %740 = vmatpush1.bf16.xpose.msra.mxu0 0
        %741 = vmatprep.subr.bf16.mxu0 0
        %742 = vmatpush1.bf16.xpose.msra.mxu0 0
        %743 = vmatprep.subr.bf16.mxu0 0
        %744 = vmatpush1.bf16.xpose.msra.mxu0 0
        %745 = vmatprep.subr.bf16.mxu0 0
        %746 = vmatpush1.bf16.xpose.msra.mxu0 0
        %747 = vmatprep.subr.bf16.mxu0 0
        %748 = vmatpush1.bf16.xpose.msra.mxu0 0
        %749 = vmatprep.mubr.bf16.mxu0 0
        %750 = vmatmul.mubr.bf16.gmra.mrb[0].mxu0 %v712
        %v751 = vpop.f32.mrb[0].mxu0
        %v752 = vadd.f32 %v483, %v751
        %v753 = vpop.f32.mrb[0].mxu0
        %v754 = vpop.f32.mrb[0].mxu0
        %v755 = vpop.f32.mrb[0].mxu0
        %756 = vdwg.mxu0
        %v757 = vsel %vm488, %v752, -inf
        %758 = vmax.xlane.f32.xlu0 %v757
        %v759 = vpop.xlane.xlu0 %758
        %v760 = vsub.f32 %v752, %v759
        %v761 = vmul.f32 %v760, 1.442695
        %v762 = vpow.pop %v761
        %v763 = vsel %vm488, %v762, 0.0
        %764 = vadd.xlane.f32.xlu0 %v763
        %v765 = vpop.xlane.xlu0 %764
        %v766 = vrcp.pop %v765
        %v767 = vmul.f32 %v762, %v766
        %v768 = vpack.c.bf16 %v767, %v767
        %769 = vrot.lane.b32.xlu0 %v478, 48
        %v770 = vpop.permute.xlu0 %769
        %v772 = vsel %vm488, %v768, 0
        %v775 = vsel %vm552, %v770, 0
        %777 = vmatprep.subr.bf16.mxu0 0
        %778 = vmatpush1.bf16.msra.mxu0 %v775
        %779 = vmatprep.subr.bf16.mxu0 0
        %780 = vmatpush1.bf16.msra.mxu0 0
        %781 = vmatprep.subr.bf16.mxu0 0
        %782 = vmatpush1.bf16.msra.mxu0 0
        %783 = vmatprep.subr.bf16.mxu0 0
        %784 = vmatpush1.bf16.msra.mxu0 0
        %785 = vmatprep.subr.bf16.mxu0 0
        %786 = vmatpush1.bf16.msra.mxu0 0
        %787 = vmatprep.subr.bf16.mxu0 0
        %788 = vmatpush1.bf16.msra.mxu0 0
        %789 = vmatprep.subr.bf16.mxu0 0
        %790 = vmatpush1.bf16.msra.mxu0 0
        %791 = vmatprep.subr.bf16.mxu0 0
        %792 = vmatpush1.bf16.msra.mxu0 0
        %793 = vmatprep.subr.bf16.mxu0 0
        %794 = vmatpush1.bf16.msra.mxu0 0
        %795 = vmatprep.subr.bf16.mxu0 0
        %796 = vmatpush1.bf16.msra.mxu0 0
        %797 = vmatprep.subr.bf16.mxu0 0
        %798 = vmatpush1.bf16.msra.mxu0 0
        %799 = vmatprep.subr.bf16.mxu0 0
        %800 = vmatpush1.bf16.msra.mxu0 0
        %801 = vmatprep.subr.bf16.mxu0 0
        %802 = vmatpush1.bf16.msra.mxu0 0
        %803 = vmatprep.subr.bf16.mxu0 0
        %804 = vmatpush1.bf16.msra.mxu0 0
        %805 = vmatprep.subr.bf16.mxu0 0
        %806 = vmatpush1.bf16.msra.mxu0 0
        %807 = vmatprep.subr.bf16.mxu0 0
        %808 = vmatpush1.bf16.msra.mxu0 0
        %809 = vmatprep.mubr.bf16.mxu0 0
        %810 = vmatmul.mubr.bf16.gmra.mrb[0].mxu0 %v772
        %v811 = vpop.f32.mrb[0].mxu0
        %v812 = vadd.f32 0.0, %v811
        %v813 = vpop.f32.mrb[0].mxu0
        %v814 = vpop.f32.mrb[0].mxu0
        %v815 = vpop.f32.mrb[0].mxu0
        %816 = vdwg.mxu0
        %817 = vrot.lane.b32.xlu0 %v477, 104
        %v818 = vpop.permute.xlu0 %817
        %819 = vrot.lane.b32.xlu0 %v478, 72
        %v820 = vpop.permute.xlu0 %819
        %v822 = vsel %vm488, %v818, 0
        %v825 = vsel %vm488, %v820, 0
        %827 = vmatprep.subr.bf16.mxu0 0
        %828 = vmatpush1.bf16.xpose.msra.mxu0 %v825
        %829 = vmatprep.subr.bf16.mxu0 0
        %830 = vmatpush1.bf16.xpose.msra.mxu0 0
        %831 = vmatprep.subr.bf16.mxu0 0
        %832 = vmatpush1.bf16.xpose.msra.mxu0 0
        %833 = vmatprep.subr.bf16.mxu0 0
        %834 = vmatpush1.bf16.xpose.msra.mxu0 0
        %835 = vmatprep.subr.bf16.mxu0 0
        %836 = vmatpush1.bf16.xpose.msra.mxu0 0
        %837 = vmatprep.subr.bf16.mxu0 0
        %838 = vmatpush1.bf16.xpose.msra.mxu0 0
        %839 = vmatprep.subr.bf16.mxu0 0
        %840 = vmatpush1.bf16.xpose.msra.mxu0 0
        %841 = vmatprep.subr.bf16.mxu0 0
        %842 = vmatpush1.bf16.xpose.msra.mxu0 0
        %843 = vmatprep.subr.bf16.mxu0 0
        %844 = vmatpush1.bf16.xpose.msra.mxu0 0
        %845 = vmatprep.subr.bf16.mxu0 0
        %846 = vmatpush1.bf16.xpose.msra.mxu0 0
        %847 = vmatprep.subr.bf16.mxu0 0
        %848 = vmatpush1.bf16.xpose.msra.mxu0 0
        %849 = vmatprep.subr.bf16.mxu0 0
        %850 = vmatpush1.bf16.xpose.msra.mxu0 0
        %851 = vmatprep.subr.bf16.mxu0 0
        %852 = vmatpush1.bf16.xpose.msra.mxu0 0
        %853 = vmatprep.subr.bf16.mxu0 0
        %854 = vmatpush1.bf16.xpose.msra.mxu0 0
        %855 = vmatprep.subr.bf16.mxu0 0
        %856 = vmatpush1.bf16.xpose.msra.mxu0 0
        %857 = vmatprep.subr.bf16.mxu0 0
        %858 = vmatpush1.bf16.xpose.msra.mxu0 0
        %859 = vmatprep.mubr.bf16.mxu0 0
        %860 = vmatmul.mubr.bf16.gmra.mrb[0].mxu0 %v822
        %v861 = vpop.f32.mrb[0].mxu0
        %v862 = vadd.f32 %v483, %v861
        %v863 = vpop.f32.mrb[0].mxu0
        %v864 = vpop.f32.mrb[0].mxu0
        %v865 = vpop.f32.mrb[0].mxu0
        %866 = vdwg.mxu0
        %v867 = vsel %vm488, %v862, -inf
        %868 = vmax.xlane.f32.xlu0 %v867
        %v869 = vpop.xlane.xlu0 %868
        %v870 = vsub.f32 %v862, %v869
        %v871 = vmul.f32 %v870, 1.442695
        %v872 = vpow.pop %v871
        %v873 = vsel %vm488, %v872, 0.0
        %874 = vadd.xlane.f32.xlu0 %v873
        %v875 = vpop.xlane.xlu0 %874
        %v876 = vrcp.pop %v875
        %v877 = vmul.f32 %v872, %v876
        %v878 = vpack.c.bf16 %v877, %v877
        %879 = vrot.lane.b32.xlu0 %v478, 40
        %v880 = vpop.permute.xlu0 %879
        %v882 = vsel %vm488, %v878, 0
        %v885 = vsel %vm552, %v880, 0
        %887 = vmatprep.subr.bf16.mxu0 0
        %888 = vmatpush1.bf16.msra.mxu0 %v885
        %889 = vmatprep.subr.bf16.mxu0 0
        %890 = vmatpush1.bf16.msra.mxu0 0
        %891 = vmatprep.subr.bf16.mxu0 0
        %892 = vmatpush1.bf16.msra.mxu0 0
        %893 = vmatprep.subr.bf16.mxu0 0
        %894 = vmatpush1.bf16.msra.mxu0 0
        %895 = vmatprep.subr.bf16.mxu0 0
        %896 = vmatpush1.bf16.msra.mxu0 0
        %897 = vmatprep.subr.bf16.mxu0 0
        %898 = vmatpush1.bf16.msra.mxu0 0
        %899 = vmatprep.subr.bf16.mxu0 0
        %900 = vmatpush1.bf16.msra.mxu0 0
        %901 = vmatprep.subr.bf16.mxu0 0
        %902 = vmatpush1.bf16.msra.mxu0 0
        %903 = vmatprep.subr.bf16.mxu0 0
        %904 = vmatpush1.bf16.msra.mxu0 0
        %905 = vmatprep.subr.bf16.mxu0 0
        %906 = vmatpush1.bf16.msra.mxu0 0
        %907 = vmatprep.subr.bf16.mxu0 0
        %908 = vmatpush1.bf16.msra.mxu0 0
        %909 = vmatprep.subr.bf16.mxu0 0
        %910 = vmatpush1.bf16.msra.mxu0 0
        %911 = vmatprep.subr.bf16.mxu0 0
        %912 = vmatpush1.bf16.msra.mxu0 0
        %913 = vmatprep.subr.bf16.mxu0 0
        %914 = vmatpush1.bf16.msra.mxu0 0
        %915 = vmatprep.subr.bf16.mxu0 0
        %916 = vmatpush1.bf16.msra.mxu0 0
        %917 = vmatprep.subr.bf16.mxu0 0
        %918 = vmatpush1.bf16.msra.mxu0 0
        %919 = vmatprep.mubr.bf16.mxu0 0
        %920 = vmatmul.mubr.bf16.gmra.mrb[0].mxu0 %v882
        %v921 = vpop.f32.mrb[0].mxu0
        %v922 = vadd.f32 0.0, %v921
        %v923 = vpop.f32.mrb[0].mxu0
        %v924 = vpop.f32.mrb[0].mxu0
        %v925 = vpop.f32.mrb[0].mxu0
        %926 = vdwg.mxu0
        %928 = vrot.lane.b32.xlu0 %v702, 8
        %v929 = vpop.permute.xlu0 %928
        %932 = vrot.lane.b32.xlu0 %v812, 16
        %v933 = vpop.permute.xlu0 %932
        %936 = vrot.lane.b32.xlu0 %v922, 24
        %v937 = vpop.permute.xlu0 %936
        %v939 = vsel %vm488, %v591, %v929
        %vm940 = vcmask 130048
        %v941 = vsel %vm940, %v939, %v933
        %vm942 = vcmask 195584
        %v943 = vsel %vm942, %v941, %v937
        %v944 = vpack.c.bf16 %v943, %v943
        %s945 = smul.addr %s31, 4
        %s946 = scalar_lea.vmem [#allocation3], %s945
        %vm947 = vcmask 257024
        %948 = vst.msk [vmem:[%s946] sm:$0xf] %vm947, %v944
        // Predicated region
        $region69: #{tpu_custom_call.1} parent=51 // pred_check
          %p949 = pneg %p399
        $region70: #{tpu_custom_call.1} parent=51 // pred_check_branch
          %951 = sbr.rel (%p949) target = $region72
        $region71: #{tpu_custom_call.1} parent=51 // pred_region
          %v952 = vld [vmem:[%s345] sm:$0xff]
          %v953 = vld [vmem:[%s5] sm:$0x1]
          %v955 = vlaneseq
          %v956 = vshrl.u32 %v955, 7
          %v957 = vsub.s32 0, %v956
          %v958 = vrot.slane %v953, %v957
          %v960 = vadd.f32 %v952, %v958
          %v961 = vld [vmem:[#allocation3] sm:$0xf]
          %v962 = vld [vmem:[#allocation9] sm:$0xf]
          %v963 = vld [vmem:[#allocation9 + $0x4] sm:$0xf]
          %v964 = vld [vmem:[#allocation9 + $0x8] sm:$0xf]
          %v965 = vld [vmem:[#allocation9 + $0xc] sm:$0xf]
          %v970 = vunpack.c.l.b16 %v962
          %v971 = vunpack.c.l.b16 %v963
          %v972 = vunpack.c.l.b16 %v964
          %v973 = vunpack.c.l.b16 %v965
          %v974 = vpack.c.b16 %v971, %v970
          %v975 = vpack.c.b16 %v973, %v972
          %v979 = vsel %vm432, %v961, 0
          %981 = vmatprep.subr.bf16.mxu0 0
          %982 = vmatpush1.bf16.msra.mxu0 %v974
          %983 = vmatprep.subr.bf16.mxu0 0
          %984 = vmatpush1.bf16.msra.mxu0 %v975
          %985 = vmatprep.subr.bf16.mxu0 0
          %986 = vmatpush1.bf16.msra.mxu0 0
          %987 = vmatprep.subr.bf16.mxu0 0
          %988 = vmatpush1.bf16.msra.mxu0 0
          %989 = vmatprep.subr.bf16.mxu0 0
          %990 = vmatpush1.bf16.msra.mxu0 0
          %991 = vmatprep.subr.bf16.mxu0 0
          %992 = vmatpush1.bf16.msra.mxu0 0
          %993 = vmatprep.subr.bf16.mxu0 0
          %994 = vmatpush1.bf16.msra.mxu0 0
          %995 = vmatprep.subr.bf16.mxu0 0
          %996 = vmatpush1.bf16.msra.mxu0 0
          %997 = vmatprep.subr.bf16.mxu0 0
          %998 = vmatpush1.bf16.msra.mxu0 0
          %999 = vmatprep.subr.bf16.mxu0 0
          %1000 = vmatpush1.bf16.msra.mxu0 0
          %1001 = vmatprep.subr.bf16.mxu0 0
          %1002 = vmatpush1.bf16.msra.mxu0 0
          %1003 = vmatprep.subr.bf16.mxu0 0
          %1004 = vmatpush1.bf16.msra.mxu0 0
          %1005 = vmatprep.subr.bf16.mxu0 0
          %1006 = vmatpush1.bf16.msra.mxu0 0
          %1007 = vmatprep.subr.bf16.mxu0 0
          %1008 = vmatpush1.bf16.msra.mxu0 0
          %1009 = vmatprep.subr.bf16.mxu0 0
          %1010 = vmatpush1.bf16.msra.mxu0 0
          %1011 = vmatprep.subr.bf16.mxu0 0
          %1012 = vmatpush1.bf16.msra.mxu0 0
          %1013 = vmatprep.mubr.bf16.mxu0 0
          %1014 = vmatmul.mubr.bf16.gmra.mrb[0].mxu0 %v979
          %v1015 = vpop.f32.mrb[0].mxu0
          %v1016 = vadd.f32 0.0, %v1015
          %v1017 = vpop.f32.mrb[0].mxu0
          %v1018 = vpop.f32.mrb[0].mxu0
          %v1019 = vpop.f32.mrb[0].mxu0
          %1020 = vdwg.mxu0
          %v1021 = vadd.f32 %v960, %v1016
          %v1022 = vsel %vm432, %v1021, 0.0
          %1023 = vadd.xlane.f32.xlu0 %v1022
          %v1024 = vpop.xlane.xlu0 %1023
          %v1025 = vmul.f32 %v1024, 0.03125
          %v1026 = vsub.f32 %v1021, %v1025
          %v1027 = vmul.f32 %v1026, %v1026
          %v1028 = vsel %vm432, %v1027, 0.0
          %1029 = vadd.xlane.f32.xlu0 %v1028
          %v1030 = vpop.xlane.xlu0 %1029
          %v1031 = vmul.f32 %v1030, 0.03125
          %v1032 = vadd.f32 %v1031, 1e-12
          %v1033 = vrsqrt.pop %v1032
          %v1034 = vmul.f32 %v1026, %v1033
          %v1035 = vld [vmem:[%s6] sm:$0x1]
          %v1037 = vlaneseq
          %v1038 = vshrl.u32 %v1037, 7
          %v1039 = vsub.s32 0, %v1038
          %v1040 = vrot.slane %v1035, %v1039
          %v1042 = vmul.f32 %v1034, %v1040
          %v1043 = vld [vmem:[%s7] sm:$0x1]
          %v1045 = vlaneseq
          %v1046 = vshrl.u32 %v1045, 7
          %v1047 = vsub.s32 0, %v1046
          %v1048 = vrot.slane %v1043, %v1047
          %v1050 = vadd.f32 %v1042, %v1048
          %1051 = vst.msk [vmem:[%s391] sm:$0xff] %vm432, %v1050
        $region72: #{tpu_custom_call.1} parent=51 // pred_fallthru
          _
        %s1052 = sand.u32 %s234, 1
        %s1053 = scalar_lea.sflag [#allocation6], %s1052
        %s1054 = sand.u32 %s234, 1
        %s1055 = smul.addr %s1054, 8
        %s1056 = scalar_lea.vmem [#allocation10], %s1055
        // Predicated region
        $region73: #{tpu_custom_call.1} parent=51 // pred_check
          %p1057 = pneg %p244
        $region74: #{tpu_custom_call.1} parent=51 // pred_check_branch
          %1059 = sbr.rel (%p1057) target = $region76
        $region75: #{tpu_custom_call.1} parent=51 // pred_region
          %s1061 = ssub.s32 128, 128
          %1062 = vsyncadd %s1053, %s1061
          %s1063 = smul.addr %s30, 128
          %s1064 = scalar_lea.hbm %s8, %s1063
          %s1066 = sshll.u32 %s1056, 4
          %s1067 = int_to_ptr.vmem [resolvable:$true] %s1066
          %1069 = dma.vmem_to_hbm [thread:$0]  %s1067, 128, %s1064, %s1053
        $region76: #{tpu_custom_call.1} parent=51 // pred_fallthru
          _
      $region52: #{tpu_custom_call.1} parent=5 // pred_fallthru
        _
      %p1070 = scmp.le.s32.totalorder 2, %s21
      // Predicated region
      $region77: #{tpu_custom_call.1} parent=5 // pred_check
        %p1071 = pneg %p1070
      $region78: #{tpu_custom_call.1} parent=5 // pred_check_branch
        %1073 = sbr.rel (%p1071) target = $region80
      $region79: #{tpu_custom_call.1} parent=5 // pred_region
        %s1074 = ssub.s32 %s21, 2
        // Predicated region
        $region81: #{tpu_custom_call.1} parent=79 // pred_check
          %p1075 = pneg %p250
        $region82: #{tpu_custom_call.1} parent=79 // pred_check_branch
          %1077 = sbr.rel (%p1075) target = $region84
        $region83: #{tpu_custom_call.1} parent=79 // pred_region
          %s1078 = sand.u32 %s235, 1
          %s1079 = scalar_lea.sflag [#allocation6], %s1078
          %s1080 = sand.u32 %s235, 1
          %s1081 = smul.addr %s1080, 8
          %s1082 = scalar_lea.vmem [#allocation10], %s1081
          %1083 = dma.done %s1079, 128
        $region84: #{tpu_custom_call.1} parent=79 // pred_fallthru
          _
      $region80: #{tpu_custom_call.1} parent=5 // pred_fallthru
        _
    $region6: #{tpu_custom_call.1} parent=1 // loop_footer
      %s25 = sadd.s32 1, %s21
    $region7: #{tpu_custom_call.1} parent=1 // loop_footer_branch
      %20 = sbr.rel target = $region3
    $region8: #{tpu_custom_call.1} parent=1 // loop_exit
      _
    %1084 = vsyncpa [#allocation5], 1
    %s1085 = scalar_lea.sflag [#allocation5], 1
    %1086 = vsyncpa %s1085, 1
    %1087 = vsyncpa [#allocation8], 1
    %1088 = vsyncpa [#allocation6], 1
    %s1089 = scalar_lea.sflag [#allocation6], 1
    %1090 = vsyncpa %s1089, 1

</llo_original>
